<compile_context>
chip_gen: v6e
topology: v6e:2x2x1
jax: 0.10.0
libtpu: 0.0.40
codegen_flags: <defaults>
</compile_context>

<pallas_src>
import functools

import jax
import jax.numpy as jnp
from jax.experimental import pallas as pl
from jax.experimental.pallas import tpu as pltpu


def _lstm_head_kernel(ids_ref, emb_ref, wih_ref, whh_ref, b_ref, wlin_ref,
                      blin_ref, out_ref, x_buf, *, hidden_size: int,
                      seq_len: int):
    """Embedding gather + LSTM recurrence + one V-tile of the final Linear.

    ids_ref  : SMEM (seq,)          token ids (scalar prefetch)
    emb_ref  : VMEM (vocab, H)      embedding table (f32, resident)
    wih_ref  : VMEM (H, 4H)         input->gates weights (bf16, transposed)
    whh_ref  : VMEM (H, 4H)         hidden->gates weights (bf16, transposed)
    b_ref    : VMEM (1, 4H)         b_ih + b_hh (f32, gate order i, f, g, o)
    wlin_ref : VMEM (2H, Vt)        current V-tile of final Linear weight (bf16)
    blin_ref : VMEM (1, Vt)         current V-tile of final Linear bias (f32)
    out_ref  : VMEM (1, Vt)         current V-tile of logits (f32)
    x_buf    : VMEM (seq, H)        scratch: gathered embeddings (f32)
    """
    H = hidden_size
    seq = seq_len

    # --- in-kernel embedding gather: plain dynamic-slice vector loads from
    # the VMEM-resident table (no DMA descriptors / semaphores).
    for t in range(seq):
        x_buf[pl.ds(t, 1), :] = emb_ref[pl.ds(ids_ref[t], 1), :]

    # --- hoisted input projection: one (seq, H) x (H, 4H) bf16 MXU pass with
    # f32 accumulation + bias.  Keeps the serial chain to h @ W_hh + xg[t].
    xg = (jnp.dot(x_buf[...].astype(jnp.bfloat16), wih_ref[...],
                  preferred_element_type=jnp.float32)
          + b_ref[...])                                   # (seq, 4H) f32

    whh = whh_ref[...]                                    # (H, 4H) bf16
    h = jnp.zeros((1, H), jnp.float32)
    c = jnp.zeros((1, H), jnp.float32)

    # --- fully unrolled recurrence (seq static & small).  Gate math in f32
    # (required on v5e; fast VPU/EUP path everywhere).  sigmoid/tanh are each
    # applied once to the full (1, 4H) gates vreg (2 EUP passes per step).
    for t in range(seq):
        gates = xg[t:t + 1, :] + jnp.dot(
            h.astype(jnp.bfloat16), whh,
            preferred_element_type=jnp.float32)           # (1, 4H) f32
        sig = jax.nn.sigmoid(gates)
        tnh = jnp.tanh(gates)
        i_g = sig[:, 0 * H:1 * H]
        f_g = sig[:, 1 * H:2 * H]
        g_g = tnh[:, 2 * H:3 * H]
        o_g = sig[:, 3 * H:4 * H]
        c = f_g * c + i_g * g_g
        h = o_g * jnp.tanh(c)

    # --- fused epilogue: lane-concat h||c (cheap XLU) then a single
    # (1, 2H) x (2H, Vt) bf16 dot with f32 accumulation + bias.
    hc = jnp.concatenate([h, c], axis=1).astype(jnp.bfloat16)  # (1, 2H)
    out_ref[...] = (jnp.dot(hc, wlin_ref[...],
                            preferred_element_type=jnp.float32)
                    + blin_ref[...])


def lstm_forward(token_ids, emb_w, w_ih_t, w_hh_t, b_lstm, w_lin_t, b_lin,
                 *, tile_v: int = 256):
    """Full forward: one Pallas kernel (gather + LSTM + V-tiled Linear).

    Expected caller-side dtypes (prepared once at model load):
      token_ids int32, emb_w f32, w_ih_t/w_hh_t/w_lin_t bf16, biases f32.
    """
    seq_len = token_ids.shape[0]
    vocab_size, hidden_size = emb_w.shape
    out_features = w_lin_t.shape[1]
    H = hidden_size
    assert H % 8 == 0, "H must be a multiple of 8 (sublane-aligned slices)"
    assert w_ih_t.shape == (H, 4 * H) and w_hh_t.shape == (H, 4 * H)
    assert w_lin_t.shape[0] == 2 * H

    # Pad the vocab (output) dim to a multiple of the tile: lane-dense stores,
    # full MXU N tiles.  No-op at the toy shape here.
    # TODO(synk): for the real 30522 vocab, do this padding once at load time.
    v_pad = tile_v * pl.cdiv(out_features, tile_v)
    if v_pad != out_features:
        w_lin_t = jnp.pad(w_lin_t, ((0, 0), (0, v_pad - out_features)))
        b_lin = jnp.pad(b_lin, ((0, 0), (0, v_pad - out_features)))

    kernel = functools.partial(_lstm_head_kernel,
                               hidden_size=hidden_size, seq_len=seq_len)

    grid_spec = pltpu.PrefetchScalarGridSpec(
        num_scalar_prefetch=1,                  # token ids -> SMEM
        grid=(v_pad // tile_v,),
        in_specs=[
            pl.BlockSpec((vocab_size, H), lambda j, ids: (0, 0)),   # emb
            pl.BlockSpec((H, 4 * H), lambda j, ids: (0, 0)),        # W_ih^T
            pl.BlockSpec((H, 4 * H), lambda j, ids: (0, 0)),        # W_hh^T
            pl.BlockSpec((1, 4 * H), lambda j, ids: (0, 0)),        # b_lstm
            pl.BlockSpec((2 * H, tile_v), lambda j, ids: (0, j)),   # W_lin^T
            pl.BlockSpec((1, tile_v), lambda j, ids: (0, j)),       # b_lin
        ],
        out_specs=pl.BlockSpec((1, tile_v), lambda j, ids: (0, j)),
        scratch_shapes=[pltpu.VMEM((seq_len, hidden_size), jnp.float32)],
    )

    out = pl.pallas_call(
        kernel,
        out_shape=jax.ShapeDtypeStruct((1, v_pad), jnp.float32),
        grid_spec=grid_spec,
        compiler_params=pltpu.CompilerParams(
            dimension_semantics=("parallel",)),   # shard V tiles across TCs
    )(token_ids, emb_w, w_ih_t, w_hh_t, b_lstm, w_lin_t, b_lin)

    if v_pad != out_features:
        out = out[:, :out_features]
    return out                                            # (1, vocab_size)


def _reference_forward(token_ids, emb_w, w_ih_t, w_hh_t, b_lstm, w_lin_t,
                       b_lin):
    """Pure-JAX reference mirroring torch.nn.LSTM semantics (same bf16
    weight / f32 accumulation scheme as the kernel)."""
    H = emb_w.shape[1]
    x = jnp.take(emb_w, token_ids, axis=0)
    xg = jnp.dot(x.astype(jnp.bfloat16), w_ih_t,
                 preferred_element_type=jnp.float32) + b_lstm
    h = jnp.zeros((1, H), jnp.float32)
    c = jnp.zeros((1, H), jnp.float32)
    for t in range(x.shape[0]):
        gates = xg[t:t + 1] + jnp.dot(h.astype(jnp.bfloat16), w_hh_t,
                                      preferred_element_type=jnp.float32)
        i_g = jax.nn.sigmoid(gates[:, 0 * H:1 * H])
        f_g = jax.nn.sigmoid(gates[:, 1 * H:2 * H])
        g_g = jnp.tanh(gates[:, 2 * H:3 * H])
        o_g = jax.nn.sigmoid(gates[:, 3 * H:4 * H])
        c = f_g * c + i_g * g_g
        h = o_g * jnp.tanh(c)
    hc = jnp.concatenate([h, c], axis=1).astype(jnp.bfloat16)
    return jnp.dot(hc, w_lin_t, preferred_element_type=jnp.float32) + b_lin


if __name__ == "__main__":
    # Small, forward-consistent shapes.
    hidden_size = 32          # H
    vocab_size = 512          # synthetic stand-in for BERT's 30522
    seq_len = 8               # tokenized prompt length (batch = 1)

    key = jax.random.PRNGKey(0)
    k_tok, k_ih, k_hh, k_bih, k_bhh, k_lw, k_lb, k_emb = jax.random.split(
        key, 8)

    # Tokenized prompt (what encode_prompt would produce), batch squeezed out.
    token_ids = jax.random.randint(k_tok, (seq_len,), 0,
                                   vocab_size).astype(jnp.int32)

    # Embedding: module __init__ explicitly does constant_(weight, 0).
    emb_w = jnp.zeros((vocab_size, hidden_size), jnp.float32)

    # LSTM params (PyTorch-style uniform init scale), stored transposed
    # (in, out); matmul weights prepared in bf16 ONCE at load time.
    s = 1.0 / jnp.sqrt(hidden_size)
    w_ih_t = jax.random.uniform(k_ih, (hidden_size, 4 * hidden_size),
                                jnp.float32, -s, s).astype(jnp.bfloat16)
    w_hh_t = jax.random.uniform(k_hh, (hidden_size, 4 * hidden_size),
                                jnp.float32, -s, s).astype(jnp.bfloat16)
    b_ih = jax.random.uniform(k_bih, (1, 4 * hidden_size), jnp.float32, -s, s)
    b_hh = jax.random.uniform(k_bhh, (1, 4 * hidden_size), jnp.float32, -s, s)
    b_lstm = b_ih + b_hh      # gate order: i, f, g, o (PyTorch convention)

    # Final Linear: in = 2H (cat of h_n, c_n), out = vocab_size.
    s_lin = 1.0 / jnp.sqrt(2 * hidden_size)
    w_lin_t = jax.random.uniform(k_lw, (2 * hidden_size, vocab_size),
                                 jnp.float32, -s_lin,
                                 s_lin).astype(jnp.bfloat16)
    b_lin = jax.random.uniform(k_lb, (1, vocab_size), jnp.float32,
                               -s_lin, s_lin)

    # --- run 1: spec-faithful (zero embedding, as in the PyTorch module).
    logits = lstm_forward(token_ids, emb_w, w_ih_t, w_hh_t, b_lstm,
                          w_lin_t, b_lin)
    logits = jax.block_until_ready(logits)
    ref = _reference_forward(token_ids, emb_w, w_ih_t, w_hh_t, b_lstm,
                             w_lin_t, b_lin)
    assert logits.shape == (1, vocab_size)
    assert jnp.allclose(logits, ref, atol=2e-3, rtol=2e-3)

    # --- run 2: non-zero embedding to actually exercise the in-kernel gather
    # and the hoisted x @ W_ih path (stronger numerics check).
    emb_rand = 0.1 * jax.random.normal(k_emb, (vocab_size, hidden_size),
                                       jnp.float32)
    logits2 = lstm_forward(token_ids, emb_rand, w_ih_t, w_hh_t, b_lstm,
                           w_lin_t, b_lin)
    logits2 = jax.block_until_ready(logits2)
    ref2 = _reference_forward(token_ids, emb_rand, w_ih_t, w_hh_t, b_lstm,
                              w_lin_t, b_lin)
    assert jnp.allclose(logits2, ref2, atol=2e-3, rtol=2e-3)

    # TODO(synk): tokenizer / text-generator / loss / update plumbing has no
    # Pallas equivalent; only the numeric forward path is implemented.
    print("KERNEL_OK")
</pallas_src>

<mosaic_0001>
module attributes {stable_mosaic.version = 11 : i64} {
  func.func @_lstm_head_kernel(%arg0: i32, %arg1: memref<8xi32, #tpu.memory_space<smem>>, %arg2: memref<512x32xf32, #tpu.memory_space<vmem>>, %arg3: memref<32x128xbf16, #tpu.memory_space<vmem>>, %arg4: memref<32x128xbf16, #tpu.memory_space<vmem>>, %arg5: memref<1x128xf32, #tpu.memory_space<vmem>>, %arg6: memref<64x256xbf16, #tpu.memory_space<vmem>>, %arg7: memref<1x256xf32, #tpu.memory_space<vmem>>, %arg8: memref<1x256xf32, #tpu.memory_space<vmem>>, %arg9: memref<8x32xf32, #tpu.memory_space<vmem>>) attributes {dimension_semantics = [#tpu.dimension_semantics<parallel>], iteration_bounds = array<i64: 2>, scalar_prefetch = 1 : i64, scratch_operands = 1 : i64, tpu.core_type = #tpu.core_type<tc>, window_params = [{pipeline_mode = #tpu.pipeline_mode<synchronous>, transform_indices = @transform_0, window_bounds = array<i64: 512, 32>}, {pipeline_mode = #tpu.pipeline_mode<synchronous>, transform_indices = @transform_1, window_bounds = array<i64: 32, 128>}, {pipeline_mode = #tpu.pipeline_mode<synchronous>, transform_indices = @transform_2, window_bounds = array<i64: 32, 128>}, {pipeline_mode = #tpu.pipeline_mode<synchronous>, transform_indices = @transform_3, window_bounds = array<i64: 1, 128>}, {transform_indices = @transform_4, window_bounds = array<i64: 64, 256>}, {transform_indices = @transform_5, window_bounds = array<i64: 1, 256>}, {transform_indices = @transform_6, window_bounds = array<i64: 1, 256>}]} {
    %c0 = arith.constant 0 : index
    %0 = memref.load %arg1[%c0] : memref<8xi32, #tpu.memory_space<smem>>
    %1 = arith.index_cast %0 : i32 to index
    %c0_0 = arith.constant 0 : index
    %2 = vector.load %arg2[%1, %c0_0] : memref<512x32xf32, #tpu.memory_space<vmem>>, vector<1x32xf32>
    %c0_1 = arith.constant 0 : index
    %c0_2 = arith.constant 0 : index
    %3 = vector.load %arg9[%c0_1, %c0_2] : memref<8x32xf32, #tpu.memory_space<vmem>>, vector<1x32xf32>
    tpu.vector_store %arg9[%c0_1, %c0_2], %2 {strides = array<i32>} : memref<8x32xf32, #tpu.memory_space<vmem>>, vector<1x32xf32>,
    %c1 = arith.constant 1 : index
    %4 = memref.load %arg1[%c1] : memref<8xi32, #tpu.memory_space<smem>>
    %5 = arith.index_cast %4 : i32 to index
    %c0_3 = arith.constant 0 : index
    %6 = vector.load %arg2[%5, %c0_3] : memref<512x32xf32, #tpu.memory_space<vmem>>, vector<1x32xf32>
    %c1_4 = arith.constant 1 : index
    %c0_5 = arith.constant 0 : index
    %7 = vector.load %arg9[%c1_4, %c0_5] : memref<8x32xf32, #tpu.memory_space<vmem>>, vector<1x32xf32>
    tpu.vector_store %arg9[%c1_4, %c0_5], %6 {strides = array<i32>} : memref<8x32xf32, #tpu.memory_space<vmem>>, vector<1x32xf32>,
    %c2 = arith.constant 2 : index
    %8 = memref.load %arg1[%c2] : memref<8xi32, #tpu.memory_space<smem>>
    %9 = arith.index_cast %8 : i32 to index
    %c0_6 = arith.constant 0 : index
    %10 = vector.load %arg2[%9, %c0_6] : memref<512x32xf32, #tpu.memory_space<vmem>>, vector<1x32xf32>
    %c2_7 = arith.constant 2 : index
    %c0_8 = arith.constant 0 : index
    %11 = vector.load %arg9[%c2_7, %c0_8] : memref<8x32xf32, #tpu.memory_space<vmem>>, vector<1x32xf32>
    tpu.vector_store %arg9[%c2_7, %c0_8], %10 {strides = array<i32>} : memref<8x32xf32, #tpu.memory_space<vmem>>, vector<1x32xf32>,
    %c3 = arith.constant 3 : index
    %12 = memref.load %arg1[%c3] : memref<8xi32, #tpu.memory_space<smem>>
    %13 = arith.index_cast %12 : i32 to index
    %c0_9 = arith.constant 0 : index
    %14 = vector.load %arg2[%13, %c0_9] : memref<512x32xf32, #tpu.memory_space<vmem>>, vector<1x32xf32>
    %c3_10 = arith.constant 3 : index
    %c0_11 = arith.constant 0 : index
    %15 = vector.load %arg9[%c3_10, %c0_11] : memref<8x32xf32, #tpu.memory_space<vmem>>, vector<1x32xf32>
    tpu.vector_store %arg9[%c3_10, %c0_11], %14 {strides = array<i32>} : memref<8x32xf32, #tpu.memory_space<vmem>>, vector<1x32xf32>,
    %c4 = arith.constant 4 : index
    %16 = memref.load %arg1[%c4] : memref<8xi32, #tpu.memory_space<smem>>
    %17 = arith.index_cast %16 : i32 to index
    %c0_12 = arith.constant 0 : index
    %18 = vector.load %arg2[%17, %c0_12] : memref<512x32xf32, #tpu.memory_space<vmem>>, vector<1x32xf32>
    %c4_13 = arith.constant 4 : index
    %c0_14 = arith.constant 0 : index
    %19 = vector.load %arg9[%c4_13, %c0_14] : memref<8x32xf32, #tpu.memory_space<vmem>>, vector<1x32xf32>
    tpu.vector_store %arg9[%c4_13, %c0_14], %18 {strides = array<i32>} : memref<8x32xf32, #tpu.memory_space<vmem>>, vector<1x32xf32>,
    %c5 = arith.constant 5 : index
    %20 = memref.load %arg1[%c5] : memref<8xi32, #tpu.memory_space<smem>>
    %21 = arith.index_cast %20 : i32 to index
    %c0_15 = arith.constant 0 : index
    %22 = vector.load %arg2[%21, %c0_15] : memref<512x32xf32, #tpu.memory_space<vmem>>, vector<1x32xf32>
    %c5_16 = arith.constant 5 : index
    %c0_17 = arith.constant 0 : index
    %23 = vector.load %arg9[%c5_16, %c0_17] : memref<8x32xf32, #tpu.memory_space<vmem>>, vector<1x32xf32>
    tpu.vector_store %arg9[%c5_16, %c0_17], %22 {strides = array<i32>} : memref<8x32xf32, #tpu.memory_space<vmem>>, vector<1x32xf32>,
    %c6 = arith.constant 6 : index
    %24 = memref.load %arg1[%c6] : memref<8xi32, #tpu.memory_space<smem>>
    %25 = arith.index_cast %24 : i32 to index
    %c0_18 = arith.constant 0 : index
    %26 = vector.load %arg2[%25, %c0_18] : memref<512x32xf32, #tpu.memory_space<vmem>>, vector<1x32xf32>
    %c6_19 = arith.constant 6 : index
    %c0_20 = arith.constant 0 : index
    %27 = vector.load %arg9[%c6_19, %c0_20] : memref<8x32xf32, #tpu.memory_space<vmem>>, vector<1x32xf32>
    tpu.vector_store %arg9[%c6_19, %c0_20], %26 {strides = array<i32>} : memref<8x32xf32, #tpu.memory_space<vmem>>, vector<1x32xf32>,
    %c7 = arith.constant 7 : index
    %28 = memref.load %arg1[%c7] : memref<8xi32, #tpu.memory_space<smem>>
    %29 = arith.index_cast %28 : i32 to index
    %c0_21 = arith.constant 0 : index
    %30 = vector.load %arg2[%29, %c0_21] : memref<512x32xf32, #tpu.memory_space<vmem>>, vector<1x32xf32>
    %c7_22 = arith.constant 7 : index
    %c0_23 = arith.constant 0 : index
    %31 = vector.load %arg9[%c7_22, %c0_23] : memref<8x32xf32, #tpu.memory_space<vmem>>, vector<1x32xf32>
    tpu.vector_store %arg9[%c7_22, %c0_23], %30 {strides = array<i32>} : memref<8x32xf32, #tpu.memory_space<vmem>>, vector<1x32xf32>,
    %c0_24 = arith.constant 0 : index
    %c0_25 = arith.constant 0 : index
    %32 = vector.load %arg9[%c0_24, %c0_25] : memref<8x32xf32, #tpu.memory_space<vmem>>, vector<8x32xf32>
    %33 = arith.truncf %32 : vector<8x32xf32> to vector<8x32xbf16>
    %c0_26 = arith.constant 0 : index
    %c0_27 = arith.constant 0 : index
    %34 = vector.load %arg3[%c0_26, %c0_27] : memref<32x128xbf16, #tpu.memory_space<vmem>>, vector<32x128xbf16>
    %cst = arith.constant dense<0.000000e+00> : vector<8x128xf32>
    %35 = tpu.matmul %33, %34, %cst {dimension_numbers = #tpu.dot_dimension_numbers<[1], [0], [0], [1], [0, 0, 1, 1], [], []>} : vector<8x32xbf16>, vector<32x128xbf16>, vector<8x128xf32> -> vector<8x128xf32>
    %c0_28 = arith.constant 0 : index
    %c0_29 = arith.constant 0 : index
    %36 = vector.load %arg5[%c0_28, %c0_29] : memref<1x128xf32, #tpu.memory_space<vmem>>, vector<1x128xf32>
    %37 = vector.broadcast %36 : vector<1x128xf32> to vector<8x128xf32>
    %38 = arith.addf %35, %37 : vector<8x128xf32>
    %c0_30 = arith.constant 0 : index
    %c0_31 = arith.constant 0 : index
    %39 = vector.load %arg4[%c0_30, %c0_31] : memref<32x128xbf16, #tpu.memory_space<vmem>>, vector<32x128xbf16>
    %cst_32 = arith.constant 0.000000e+00 : f32
    %40 = vector.broadcast %cst_32 : f32 to vector<1x32xf32>
    %cst_33 = arith.constant 0.000000e+00 : f32
    %41 = vector.broadcast %cst_33 : f32 to vector<1x32xf32>
    %42 = vector.extract_strided_slice %38 {offsets = [0, 0], sizes = [1, 128], strides = [1, 1]} : vector<8x128xf32> to vector<1x128xf32>
    %43 = arith.truncf %40 : vector<1x32xf32> to vector<1x32xbf16>
    %cst_34 = arith.constant dense<0.000000e+00> : vector<1x128xf32>
    %44 = tpu.matmul %43, %39, %cst_34 {dimension_numbers = #tpu.dot_dimension_numbers<[1], [0], [0], [1], [0, 0, 1, 1], [], []>} : vector<1x32xbf16>, vector<32x128xbf16>, vector<1x128xf32> -> vector<1x128xf32>
    %45 = arith.addf %42, %44 : vector<1x128xf32>
    %46 = arith.negf %45 : vector<1x128xf32>
    %47 = math.exp %46 : vector<1x128xf32>
    %cst_35 = arith.constant 1.000000e+00 : f32
    %48 = vector.broadcast %cst_35 : f32 to vector<1x128xf32>
    %49 = arith.addf %48, %47 : vector<1x128xf32>
    %50 = arith.divf %48, %49 : vector<1x128xf32>
    %51 = math.tanh %45 : vector<1x128xf32>
    %52 = vector.extract_strided_slice %50 {offsets = [0, 0], sizes = [1, 32], strides = [1, 1]} : vector<1x128xf32> to vector<1x32xf32>
    %53 = vector.extract_strided_slice %50 {offsets = [0, 32], sizes = [1, 32], strides = [1, 1]} : vector<1x128xf32> to vector<1x32xf32>
    %54 = vector.extract_strided_slice %51 {offsets = [0, 64], sizes = [1, 32], strides = [1, 1]} : vector<1x128xf32> to vector<1x32xf32>
    %55 = vector.extract_strided_slice %50 {offsets = [0, 96], sizes = [1, 32], strides = [1, 1]} : vector<1x128xf32> to vector<1x32xf32>
    %56 = arith.mulf %53, %41 : vector<1x32xf32>
    %57 = arith.mulf %52, %54 : vector<1x32xf32>
    %58 = arith.addf %56, %57 : vector<1x32xf32>
    %59 = math.tanh %58 : vector<1x32xf32>
    %60 = arith.mulf %55, %59 : vector<1x32xf32>
    %61 = vector.extract_strided_slice %38 {offsets = [1, 0], sizes = [1, 128], strides = [1, 1]} : vector<8x128xf32> to vector<1x128xf32>
    %62 = arith.truncf %60 : vector<1x32xf32> to vector<1x32xbf16>
    %cst_36 = arith.constant dense<0.000000e+00> : vector<1x128xf32>
    %63 = tpu.matmul %62, %39, %cst_36 {dimension_numbers = #tpu.dot_dimension_numbers<[1], [0], [0], [1], [0, 0, 1, 1], [], []>} : vector<1x32xbf16>, vector<32x128xbf16>, vector<1x128xf32> -> vector<1x128xf32>
    %64 = arith.addf %61, %63 : vector<1x128xf32>
    %65 = arith.negf %64 : vector<1x128xf32>
    %66 = math.exp %65 : vector<1x128xf32>
    %cst_37 = arith.constant 1.000000e+00 : f32
    %67 = vector.broadcast %cst_37 : f32 to vector<1x128xf32>
    %68 = arith.addf %67, %66 : vector<1x128xf32>
    %69 = arith.divf %67, %68 : vector<1x128xf32>
    %70 = math.tanh %64 : vector<1x128xf32>
    %71 = vector.extract_strided_slice %69 {offsets = [0, 0], sizes = [1, 32], strides = [1, 1]} : vector<1x128xf32> to vector<1x32xf32>
    %72 = vector.extract_strided_slice %69 {offsets = [0, 32], sizes = [1, 32], strides = [1, 1]} : vector<1x128xf32> to vector<1x32xf32>
    %73 = vector.extract_strided_slice %70 {offsets = [0, 64], sizes = [1, 32], strides = [1, 1]} : vector<1x128xf32> to vector<1x32xf32>
    %74 = vector.extract_strided_slice %69 {offsets = [0, 96], sizes = [1, 32], strides = [1, 1]} : vector<1x128xf32> to vector<1x32xf32>
    %75 = arith.mulf %72, %58 : vector<1x32xf32>
    %76 = arith.mulf %71, %73 : vector<1x32xf32>
    %77 = arith.addf %75, %76 : vector<1x32xf32>
    %78 = math.tanh %77 : vector<1x32xf32>
    %79 = arith.mulf %74, %78 : vector<1x32xf32>
    %80 = vector.extract_strided_slice %38 {offsets = [2, 0], sizes = [1, 128], strides = [1, 1]} : vector<8x128xf32> to vector<1x128xf32>
    %81 = arith.truncf %79 : vector<1x32xf32> to vector<1x32xbf16>
    %cst_38 = arith.constant dense<0.000000e+00> : vector<1x128xf32>
    %82 = tpu.matmul %81, %39, %cst_38 {dimension_numbers = #tpu.dot_dimension_numbers<[1], [0], [0], [1], [0, 0, 1, 1], [], []>} : vector<1x32xbf16>, vector<32x128xbf16>, vector<1x128xf32> -> vector<1x128xf32>
    %83 = arith.addf %80, %82 : vector<1x128xf32>
    %84 = arith.negf %83 : vector<1x128xf32>
    %85 = math.exp %84 : vector<1x128xf32>
    %cst_39 = arith.constant 1.000000e+00 : f32
    %86 = vector.broadcast %cst_39 : f32 to vector<1x128xf32>
    %87 = arith.addf %86, %85 : vector<1x128xf32>
    %88 = arith.divf %86, %87 : vector<1x128xf32>
    %89 = math.tanh %83 : vector<1x128xf32>
    %90 = vector.extract_strided_slice %88 {offsets = [0, 0], sizes = [1, 32], strides = [1, 1]} : vector<1x128xf32> to vector<1x32xf32>
    %91 = vector.extract_strided_slice %88 {offsets = [0, 32], sizes = [1, 32], strides = [1, 1]} : vector<1x128xf32> to vector<1x32xf32>
    %92 = vector.extract_strided_slice %89 {offsets = [0, 64], sizes = [1, 32], strides = [1, 1]} : vector<1x128xf32> to vector<1x32xf32>
    %93 = vector.extract_strided_slice %88 {offsets = [0, 96], sizes = [1, 32], strides = [1, 1]} : vector<1x128xf32> to vector<1x32xf32>
    %94 = arith.mulf %91, %77 : vector<1x32xf32>
    %95 = arith.mulf %90, %92 : vector<1x32xf32>
    %96 = arith.addf %94, %95 : vector<1x32xf32>
    %97 = math.tanh %96 : vector<1x32xf32>
    %98 = arith.mulf %93, %97 : vector<1x32xf32>
    %99 = vector.extract_strided_slice %38 {offsets = [3, 0], sizes = [1, 128], strides = [1, 1]} : vector<8x128xf32> to vector<1x128xf32>
    %100 = arith.truncf %98 : vector<1x32xf32> to vector<1x32xbf16>
    %cst_40 = arith.constant dense<0.000000e+00> : vector<1x128xf32>
    %101 = tpu.matmul %100, %39, %cst_40 {dimension_numbers = #tpu.dot_dimension_numbers<[1], [0], [0], [1], [0, 0, 1, 1], [], []>} : vector<1x32xbf16>, vector<32x128xbf16>, vector<1x128xf32> -> vector<1x128xf32>
    %102 = arith.addf %99, %101 : vector<1x128xf32>
    %103 = arith.negf %102 : vector<1x128xf32>
    %104 = math.exp %103 : vector<1x128xf32>
    %cst_41 = arith.constant 1.000000e+00 : f32
    %105 = vector.broadcast %cst_41 : f32 to vector<1x128xf32>
    %106 = arith.addf %105, %104 : vector<1x128xf32>
    %107 = arith.divf %105, %106 : vector<1x128xf32>
    %108 = math.tanh %102 : vector<1x128xf32>
    %109 = vector.extract_strided_slice %107 {offsets = [0, 0], sizes = [1, 32], strides = [1, 1]} : vector<1x128xf32> to vector<1x32xf32>
    %110 = vector.extract_strided_slice %107 {offsets = [0, 32], sizes = [1, 32], strides = [1, 1]} : vector<1x128xf32> to vector<1x32xf32>
    %111 = vector.extract_strided_slice %108 {offsets = [0, 64], sizes = [1, 32], strides = [1, 1]} : vector<1x128xf32> to vector<1x32xf32>
    %112 = vector.extract_strided_slice %107 {offsets = [0, 96], sizes = [1, 32], strides = [1, 1]} : vector<1x128xf32> to vector<1x32xf32>
    %113 = arith.mulf %110, %96 : vector<1x32xf32>
    %114 = arith.mulf %109, %111 : vector<1x32xf32>
    %115 = arith.addf %113, %114 : vector<1x32xf32>
    %116 = math.tanh %115 : vector<1x32xf32>
    %117 = arith.mulf %112, %116 : vector<1x32xf32>
    %118 = vector.extract_strided_slice %38 {offsets = [4, 0], sizes = [1, 128], strides = [1, 1]} : vector<8x128xf32> to vector<1x128xf32>
    %119 = arith.truncf %117 : vector<1x32xf32> to vector<1x32xbf16>
    %cst_42 = arith.constant dense<0.000000e+00> : vector<1x128xf32>
    %120 = tpu.matmul %119, %39, %cst_42 {dimension_numbers = #tpu.dot_dimension_numbers<[1], [0], [0], [1], [0, 0, 1, 1], [], []>} : vector<1x32xbf16>, vector<32x128xbf16>, vector<1x128xf32> -> vector<1x128xf32>
    %121 = arith.addf %118, %120 : vector<1x128xf32>
    %122 = arith.negf %121 : vector<1x128xf32>
    %123 = math.exp %122 : vector<1x128xf32>
    %cst_43 = arith.constant 1.000000e+00 : f32
    %124 = vector.broadcast %cst_43 : f32 to vector<1x128xf32>
    %125 = arith.addf %124, %123 : vector<1x128xf32>
    %126 = arith.divf %124, %125 : vector<1x128xf32>
    %127 = math.tanh %121 : vector<1x128xf32>
    %128 = vector.extract_strided_slice %126 {offsets = [0, 0], sizes = [1, 32], strides = [1, 1]} : vector<1x128xf32> to vector<1x32xf32>
    %129 = vector.extract_strided_slice %126 {offsets = [0, 32], sizes = [1, 32], strides = [1, 1]} : vector<1x128xf32> to vector<1x32xf32>
    %130 = vector.extract_strided_slice %127 {offsets = [0, 64], sizes = [1, 32], strides = [1, 1]} : vector<1x128xf32> to vector<1x32xf32>
    %131 = vector.extract_strided_slice %126 {offsets = [0, 96], sizes = [1, 32], strides = [1, 1]} : vector<1x128xf32> to vector<1x32xf32>
    %132 = arith.mulf %129, %115 : vector<1x32xf32>
    %133 = arith.mulf %128, %130 : vector<1x32xf32>
    %134 = arith.addf %132, %133 : vector<1x32xf32>
    %135 = math.tanh %134 : vector<1x32xf32>
    %136 = arith.mulf %131, %135 : vector<1x32xf32>
    %137 = vector.extract_strided_slice %38 {offsets = [5, 0], sizes = [1, 128], strides = [1, 1]} : vector<8x128xf32> to vector<1x128xf32>
    %138 = arith.truncf %136 : vector<1x32xf32> to vector<1x32xbf16>
    %cst_44 = arith.constant dense<0.000000e+00> : vector<1x128xf32>
    %139 = tpu.matmul %138, %39, %cst_44 {dimension_numbers = #tpu.dot_dimension_numbers<[1], [0], [0], [1], [0, 0, 1, 1], [], []>} : vector<1x32xbf16>, vector<32x128xbf16>, vector<1x128xf32> -> vector<1x128xf32>
    %140 = arith.addf %137, %139 : vector<1x128xf32>
    %141 = arith.negf %140 : vector<1x128xf32>
    %142 = math.exp %141 : vector<1x128xf32>
    %cst_45 = arith.constant 1.000000e+00 : f32
    %143 = vector.broadcast %cst_45 : f32 to vector<1x128xf32>
    %144 = arith.addf %143, %142 : vector<1x128xf32>
    %145 = arith.divf %143, %144 : vector<1x128xf32>
    %146 = math.tanh %140 : vector<1x128xf32>
    %147 = vector.extract_strided_slice %145 {offsets = [0, 0], sizes = [1, 32], strides = [1, 1]} : vector<1x128xf32> to vector<1x32xf32>
    %148 = vector.extract_strided_slice %145 {offsets = [0, 32], sizes = [1, 32], strides = [1, 1]} : vector<1x128xf32> to vector<1x32xf32>
    %149 = vector.extract_strided_slice %146 {offsets = [0, 64], sizes = [1, 32], strides = [1, 1]} : vector<1x128xf32> to vector<1x32xf32>
    %150 = vector.extract_strided_slice %145 {offsets = [0, 96], sizes = [1, 32], strides = [1, 1]} : vector<1x128xf32> to vector<1x32xf32>
    %151 = arith.mulf %148, %134 : vector<1x32xf32>
    %152 = arith.mulf %147, %149 : vector<1x32xf32>
    %153 = arith.addf %151, %152 : vector<1x32xf32>
    %154 = math.tanh %153 : vector<1x32xf32>
    %155 = arith.mulf %150, %154 : vector<1x32xf32>
    %156 = vector.extract_strided_slice %38 {offsets = [6, 0], sizes = [1, 128], strides = [1, 1]} : vector<8x128xf32> to vector<1x128xf32>
    %157 = arith.truncf %155 : vector<1x32xf32> to vector<1x32xbf16>
    %cst_46 = arith.constant dense<0.000000e+00> : vector<1x128xf32>
    %158 = tpu.matmul %157, %39, %cst_46 {dimension_numbers = #tpu.dot_dimension_numbers<[1], [0], [0], [1], [0, 0, 1, 1], [], []>} : vector<1x32xbf16>, vector<32x128xbf16>, vector<1x128xf32> -> vector<1x128xf32>
    %159 = arith.addf %156, %158 : vector<1x128xf32>
    %160 = arith.negf %159 : vector<1x128xf32>
    %161 = math.exp %160 : vector<1x128xf32>
    %cst_47 = arith.constant 1.000000e+00 : f32
    %162 = vector.broadcast %cst_47 : f32 to vector<1x128xf32>
    %163 = arith.addf %162, %161 : vector<1x128xf32>
    %164 = arith.divf %162, %163 : vector<1x128xf32>
    %165 = math.tanh %159 : vector<1x128xf32>
    %166 = vector.extract_strided_slice %164 {offsets = [0, 0], sizes = [1, 32], strides = [1, 1]} : vector<1x128xf32> to vector<1x32xf32>
    %167 = vector.extract_strided_slice %164 {offsets = [0, 32], sizes = [1, 32], strides = [1, 1]} : vector<1x128xf32> to vector<1x32xf32>
    %168 = vector.extract_strided_slice %165 {offsets = [0, 64], sizes = [1, 32], strides = [1, 1]} : vector<1x128xf32> to vector<1x32xf32>
    %169 = vector.extract_strided_slice %164 {offsets = [0, 96], sizes = [1, 32], strides = [1, 1]} : vector<1x128xf32> to vector<1x32xf32>
    %170 = arith.mulf %167, %153 : vector<1x32xf32>
    %171 = arith.mulf %166, %168 : vector<1x32xf32>
    %172 = arith.addf %170, %171 : vector<1x32xf32>
    %173 = math.tanh %172 : vector<1x32xf32>
    %174 = arith.mulf %169, %173 : vector<1x32xf32>
    %175 = vector.extract_strided_slice %38 {offsets = [7, 0], sizes = [1, 128], strides = [1, 1]} : vector<8x128xf32> to vector<1x128xf32>
    %176 = arith.truncf %174 : vector<1x32xf32> to vector<1x32xbf16>
    %cst_48 = arith.constant dense<0.000000e+00> : vector<1x128xf32>
    %177 = tpu.matmul %176, %39, %cst_48 {dimension_numbers = #tpu.dot_dimension_numbers<[1], [0], [0], [1], [0, 0, 1, 1], [], []>} : vector<1x32xbf16>, vector<32x128xbf16>, vector<1x128xf32> -> vector<1x128xf32>
    %178 = arith.addf %175, %177 : vector<1x128xf32>
    %179 = arith.negf %178 : vector<1x128xf32>
    %180 = math.exp %179 : vector<1x128xf32>
    %cst_49 = arith.constant 1.000000e+00 : f32
    %181 = vector.broadcast %cst_49 : f32 to vector<1x128xf32>
    %182 = arith.addf %181, %180 : vector<1x128xf32>
    %183 = arith.divf %181, %182 : vector<1x128xf32>
    %184 = math.tanh %178 : vector<1x128xf32>
    %185 = vector.extract_strided_slice %183 {offsets = [0, 0], sizes = [1, 32], strides = [1, 1]} : vector<1x128xf32> to vector<1x32xf32>
    %186 = vector.extract_strided_slice %183 {offsets = [0, 32], sizes = [1, 32], strides = [1, 1]} : vector<1x128xf32> to vector<1x32xf32>
    %187 = vector.extract_strided_slice %184 {offsets = [0, 64], sizes = [1, 32], strides = [1, 1]} : vector<1x128xf32> to vector<1x32xf32>
    %188 = vector.extract_strided_slice %183 {offsets = [0, 96], sizes = [1, 32], strides = [1, 1]} : vector<1x128xf32> to vector<1x32xf32>
    %189 = arith.mulf %186, %172 : vector<1x32xf32>
    %190 = arith.mulf %185, %187 : vector<1x32xf32>
    %191 = arith.addf %189, %190 : vector<1x32xf32>
    %192 = math.tanh %191 : vector<1x32xf32>
    %193 = arith.mulf %188, %192 : vector<1x32xf32>
    %194 = tpu.concatenate %193, %191 in 1 : vector<1x32xf32>, vector<1x32xf32> -> vector<1x64xf32>
    %195 = arith.truncf %194 : vector<1x64xf32> to vector<1x64xbf16>
    %c0_50 = arith.constant 0 : index
    %c0_51 = arith.constant 0 : index
    %196 = vector.load %arg6[%c0_50, %c0_51] : memref<64x256xbf16, #tpu.memory_space<vmem>>, vector<64x256xbf16>
    %cst_52 = arith.constant dense<0.000000e+00> : vector<1x256xf32>
    %197 = tpu.matmul %195, %196, %cst_52 {dimension_numbers = #tpu.dot_dimension_numbers<[1], [0], [0], [1], [0, 0, 1, 1], [], []>} : vector<1x64xbf16>, vector<64x256xbf16>, vector<1x256xf32> -> vector<1x256xf32>
    %c0_53 = arith.constant 0 : index
    %c0_54 = arith.constant 0 : index
    %198 = vector.load %arg7[%c0_53, %c0_54] : memref<1x256xf32, #tpu.memory_space<vmem>>, vector<1x256xf32>
    %199 = arith.addf %197, %198 : vector<1x256xf32>
    %c0_55 = arith.constant 0 : index
    %c0_56 = arith.constant 0 : index
    %200 = vector.load %arg8[%c0_55, %c0_56] : memref<1x256xf32, #tpu.memory_space<vmem>>, vector<1x256xf32>
    tpu.vector_store %arg8[%c0_55, %c0_56], %199 {strides = array<i32>} : memref<1x256xf32, #tpu.memory_space<vmem>>, vector<1x256xf32>,
    return
  }
  func.func @transform_0(%arg0: i32, %arg1: memref<8xi32, #tpu.memory_space<smem>>) -> (i32, i32) {
    %c0_i32 = arith.constant 0 : i32
    %c0_i32_0 = arith.constant 0 : i32
    %c0_i32_1 = arith.constant 0 : i32
    return %c0_i32, %c0_i32_0 : i32, i32
  }
  func.func @transform_1(%arg0: i32, %arg1: memref<8xi32, #tpu.memory_space<smem>>) -> (i32, i32) {
    %c0_i32 = arith.constant 0 : i32
    %c0_i32_0 = arith.constant 0 : i32
    %c0_i32_1 = arith.constant 0 : i32
    return %c0_i32, %c0_i32_0 : i32, i32
  }
  func.func @transform_2(%arg0: i32, %arg1: memref<8xi32, #tpu.memory_space<smem>>) -> (i32, i32) {
    %c0_i32 = arith.constant 0 : i32
    %c0_i32_0 = arith.constant 0 : i32
    %c0_i32_1 = arith.constant 0 : i32
    return %c0_i32, %c0_i32_0 : i32, i32
  }
  func.func @transform_3(%arg0: i32, %arg1: memref<8xi32, #tpu.memory_space<smem>>) -> (i32, i32) {
    %c0_i32 = arith.constant 0 : i32
    %c0_i32_0 = arith.constant 0 : i32
    %c0_i32_1 = arith.constant 0 : i32
    return %c0_i32, %c0_i32_0 : i32, i32
  }
  func.func @transform_4(%arg0: i32, %arg1: memref<8xi32, #tpu.memory_space<smem>>) -> (i32, i32) {
    %c0_i32 = arith.constant 0 : i32
    %c0_i32_0 = arith.constant 0 : i32
    return %c0_i32, %arg0 : i32, i32
  }
  func.func @transform_5(%arg0: i32, %arg1: memref<8xi32, #tpu.memory_space<smem>>) -> (i32, i32) {
    %c0_i32 = arith.constant 0 : i32
    %c0_i32_0 = arith.constant 0 : i32
    return %c0_i32, %arg0 : i32, i32
  }
  func.func @transform_6(%arg0: i32, %arg1: memref<8xi32, #tpu.memory_space<smem>>) -> (i32, i32) {
    %c0_i32 = arith.constant 0 : i32
    %c0_i32_0 = arith.constant 0 : i32
    return %c0_i32, %arg0 : i32, i32
  }
}

</mosaic_0001>

<llo_original>
// kernel: tpu_custom_call.1
$region0: #{tpu_custom_call.1}
  #allocation0 [shape = 'u32[]', space=smem, size = 0x4, offset = 0x4, fixed_abs, tag = 'smem constant byte address 0x4 - core index']
  #allocation1 [shape = 'u32[144,128]{1,0:T(1,128)}', space=vmem, size = 0x12000, scoped, tag = 'internal scratch']
  #allocation2 [shape = 'f32[8,32]{1,0:T(8,128)}', space=vmem, size = 0x1000, scoped, tag = 'scratch operand']
  #allocation3 [shape = 's32[1]{0}', space=sflag, size = 0x4, scoped, tag = 'scoped memory for tpu_custom_call.1']
  #allocation4 [shape = 'u8[512]{0}', space=smem, size = 0x200, scoped, tag = 'prefetched SMEM operand 0']
  %s0 = inlined_call_operand.vmem [shape: s32[8], index: 0, kind: input, shape index: {}]
  %s1 = inlined_call_operand.vmem [shape: f32[512,32], index: 1, kind: input, shape index: {}]
  %s2 = inlined_call_operand.vmem [shape: bf16[32,128], index: 2, kind: input, shape index: {}]
  %s3 = inlined_call_operand.vmem [shape: bf16[32,128], index: 3, kind: input, shape index: {}]
  %s4 = inlined_call_operand.vmem [shape: f32[1,128], index: 4, kind: input, shape index: {}]
  %s5 = inlined_call_operand.vmem [shape: bf16[64,512], index: 5, kind: input, shape index: {}]
  %s6 = inlined_call_operand.vmem [shape: f32[1,512], index: 6, kind: input, shape index: {}]
  %s7 = inlined_call_operand.hbm [shape: f32[1,512], index: 7, kind: output, shape index: {}]
  %s8 = sld [smem:[#allocation0]]
  $region95: #{tpu_custom_call.1} parent=0
    _
  %s10 = ssub.s32 1, %s8
  %s11 = scalar_select 0, %s10, %s8
  %s12 = sshll.u32 %s0, 4
  %s13 = int_to_ptr.vmem [resolvable:$true] %s12
  %15 = dma.vmem_to_smem %s13, 16, [#allocation4], [#allocation3]
  %16 = dma.done [#allocation3], 16
  %17 = sfence
  $region1: #{tpu_custom_call.1} parent=0
    #allocation5 [shape = 'u8[65536]{0}', space=vmem, size = 0x10000, scoped, tag = 'input window, operand 5']
    #allocation6 [shape = 'u8[2048]{0}', space=vmem, size = 0x800, scoped, tag = 'output window, operand 0']
    #allocation7 [shape = 's32[2]{0}', space=sflag, size = 0x8, scoped, tag = 'scoped memory for tpu_custom_call.1']
    %18 = vsyncpa [#allocation7], 0
    %s19 = scalar_lea.sflag [#allocation7], 1
    %20 = vsyncpa %s19, 0
    loop: start=0, step=1, limit=4
    $region2: #{tpu_custom_call.1} parent=1 // loop_pre_header
      _
    $region3: #{tpu_custom_call.1} parent=1 // loop_header
      %s22 = sphi 0, %s26
      %p23 = scmp.ge.s32.totalorder %s22, 4
      %s30 = sphi 0, %s30
      %s32 = sphi 0, %s30
      %s33 = sphi 0, %s32
      %s47 = sphi 0, %s33
      %s51 = sphi 0, %s51
      %s53 = sphi 0, %s51
      %s54 = sphi 0, %s53
      %s68 = sphi 0, %s54
      %s72 = sphi 0, %s72
      %s74 = sphi 0, %s72
      %s75 = sphi 0, %s74
      %s89 = sphi 0, %s75
      %s93 = sphi 0, %s93
      %s95 = sphi 0, %s93
      %s96 = sphi 0, %s95
      %s110 = sphi 0, %s96
      %s116 = sphi 0, %s118
      %s119 = sphi 0, %s116
      %s120 = sphi 0, %s119
      %s136 = sphi 0, %s120
      %s142 = sphi 0, %s144
      %s145 = sphi 0, %s142
      %s146 = sphi 0, %s145
      %s162 = sphi 0, %s146
      %s168 = sphi 0, %s170
      %s171 = sphi 0, %s168
      %s172 = sphi 0, %s171
      %s188 = sphi 0, %s172
    $region4: #{tpu_custom_call.1} parent=1 // loop_header_branch
      %25 = sbr.rel (%p23) target = $region8
    $region5: #{tpu_custom_call.1} parent=1 // loop_body
      %s27 = ssub.s32 %s22, 1
      %s28 = ssub.s32 %s22, 2
      %s29 = sadd.s32 %s22, 1
      %s31 = sadd.s32 %s30, 1
      %p34 = scmp.eq.s32.totalorder %s22, 1
      %p35 = scmp.ne.s32.totalorder %s30, %s32
      %p36 = scmp.eq.s32.totalorder %s22, 0
      %p37 = por %p35, %p36
      %p38 = scmp.ne.s32.totalorder %s30, %s32
      %p39 = scmp.eq.s32.totalorder %s27, 1
      %p40 = por %p38, %p39
      %p41 = scmp.ne.s32.totalorder %s32, %s33
      %p42 = scmp.eq.s32.totalorder %s27, 0
      %p43 = por %p41, %p42
      %p44 = scmp.ne.s32.totalorder %s32, %s33
      %p45 = scmp.eq.s32.totalorder %s28, 1
      %p46 = por %p44, %p45
      %p48 = scmp.ne.s32.totalorder %s33, %s47
      %p49 = scmp.eq.s32.totalorder %s28, 0
      %p50 = por %p48, %p49
      %s52 = sadd.s32 %s51, 1
      %p55 = scmp.eq.s32.totalorder %s22, 1
      %p56 = scmp.ne.s32.totalorder %s51, %s53
      %p57 = scmp.eq.s32.totalorder %s22, 0
      %p58 = por %p56, %p57
      %p59 = scmp.ne.s32.totalorder %s51, %s53
      %p60 = scmp.eq.s32.totalorder %s27, 1
      %p61 = por %p59, %p60
      %p62 = scmp.ne.s32.totalorder %s53, %s54
      %p63 = scmp.eq.s32.totalorder %s27, 0
      %p64 = por %p62, %p63
      %p65 = scmp.ne.s32.totalorder %s53, %s54
      %p66 = scmp.eq.s32.totalorder %s28, 1
      %p67 = por %p65, %p66
      %p69 = scmp.ne.s32.totalorder %s54, %s68
      %p70 = scmp.eq.s32.totalorder %s28, 0
      %p71 = por %p69, %p70
      %s73 = sadd.s32 %s72, 1
      %p76 = scmp.eq.s32.totalorder %s22, 1
      %p77 = scmp.ne.s32.totalorder %s72, %s74
      %p78 = scmp.eq.s32.totalorder %s22, 0
      %p79 = por %p77, %p78
      %p80 = scmp.ne.s32.totalorder %s72, %s74
      %p81 = scmp.eq.s32.totalorder %s27, 1
      %p82 = por %p80, %p81
      %p83 = scmp.ne.s32.totalorder %s74, %s75
      %p84 = scmp.eq.s32.totalorder %s27, 0
      %p85 = por %p83, %p84
      %p86 = scmp.ne.s32.totalorder %s74, %s75
      %p87 = scmp.eq.s32.totalorder %s28, 1
      %p88 = por %p86, %p87
      %p90 = scmp.ne.s32.totalorder %s75, %s89
      %p91 = scmp.eq.s32.totalorder %s28, 0
      %p92 = por %p90, %p91
      %s94 = sadd.s32 %s93, 1
      %p97 = scmp.eq.s32.totalorder %s22, 1
      %p98 = scmp.ne.s32.totalorder %s93, %s95
      %p99 = scmp.eq.s32.totalorder %s22, 0
      %p100 = por %p98, %p99
      %p101 = scmp.ne.s32.totalorder %s93, %s95
      %p102 = scmp.eq.s32.totalorder %s27, 1
      %p103 = por %p101, %p102
      %p104 = scmp.ne.s32.totalorder %s95, %s96
      %p105 = scmp.eq.s32.totalorder %s27, 0
      %p106 = por %p104, %p105
      %p107 = scmp.ne.s32.totalorder %s95, %s96
      %p108 = scmp.eq.s32.totalorder %s28, 1
      %p109 = por %p107, %p108
      %p111 = scmp.ne.s32.totalorder %s96, %s110
      %p112 = scmp.eq.s32.totalorder %s28, 0
      %p113 = por %p111, %p112
      %s114 = ssub.s32 %s22, %s29
      %p115 = scmp.eq.s32.totalorder %s114, 0
      %s117 = sadd.s32 %s116, 1
      %s118 = scalar_select %p115, %s116, %s117
      %p121 = pneg %p115
      %p122 = scmp.eq.s32.totalorder %s22, 1
      %p123 = por %p121, %p122
      %p124 = scmp.ne.s32.totalorder %s116, %s119
      %p125 = scmp.eq.s32.totalorder %s22, 0
      %p126 = por %p124, %p125
      %p127 = scmp.ne.s32.totalorder %s116, %s119
      %p128 = scmp.eq.s32.totalorder %s27, 1
      %p129 = por %p127, %p128
      %p130 = scmp.ne.s32.totalorder %s119, %s120
      %p131 = scmp.eq.s32.totalorder %s27, 0
      %p132 = por %p130, %p131
      %p133 = scmp.ne.s32.totalorder %s119, %s120
      %p134 = scmp.eq.s32.totalorder %s28, 1
      %p135 = por %p133, %p134
      %p137 = scmp.ne.s32.totalorder %s120, %s136
      %p138 = scmp.eq.s32.totalorder %s28, 0
      %p139 = por %p137, %p138
      %s140 = ssub.s32 %s22, %s29
      %p141 = scmp.eq.s32.totalorder %s140, 0
      %s143 = sadd.s32 %s142, 1
      %s144 = scalar_select %p141, %s142, %s143
      %p147 = pneg %p141
      %p148 = scmp.eq.s32.totalorder %s22, 1
      %p149 = por %p147, %p148
      %p150 = scmp.ne.s32.totalorder %s142, %s145
      %p151 = scmp.eq.s32.totalorder %s22, 0
      %p152 = por %p150, %p151
      %p153 = scmp.ne.s32.totalorder %s142, %s145
      %p154 = scmp.eq.s32.totalorder %s27, 1
      %p155 = por %p153, %p154
      %p156 = scmp.ne.s32.totalorder %s145, %s146
      %p157 = scmp.eq.s32.totalorder %s27, 0
      %p158 = por %p156, %p157
      %p159 = scmp.ne.s32.totalorder %s145, %s146
      %p160 = scmp.eq.s32.totalorder %s28, 1
      %p161 = por %p159, %p160
      %p163 = scmp.ne.s32.totalorder %s146, %s162
      %p164 = scmp.eq.s32.totalorder %s28, 0
      %p165 = por %p163, %p164
      %s166 = ssub.s32 %s22, %s29
      %p167 = scmp.eq.s32.totalorder %s166, 0
      %s169 = sadd.s32 %s168, 1
      %s170 = scalar_select %p167, %s168, %s169
      %p173 = pneg %p167
      %p174 = scmp.eq.s32.totalorder %s22, 1
      %p175 = por %p173, %p174
      %p176 = scmp.ne.s32.totalorder %s168, %s171
      %p177 = scmp.eq.s32.totalorder %s22, 0
      %p178 = por %p176, %p177
      %p179 = scmp.ne.s32.totalorder %s168, %s171
      %p180 = scmp.eq.s32.totalorder %s27, 1
      %p181 = por %p179, %p180
      %p182 = scmp.ne.s32.totalorder %s171, %s172
      %p183 = scmp.eq.s32.totalorder %s27, 0
      %p184 = por %p182, %p183
      %p185 = scmp.ne.s32.totalorder %s171, %s172
      %p186 = scmp.eq.s32.totalorder %s28, 1
      %p187 = por %p185, %p186
      %p189 = scmp.ne.s32.totalorder %s172, %s188
      %p190 = scmp.eq.s32.totalorder %s28, 0
      %p191 = por %p189, %p190
      %p192 = scmp.le.s32.totalorder 1, %s22
      %p193 = scmp.lt.s32.totalorder %s22, 3
      %p194 = pnand %p192, %p193
      %p195 = pneg %p194
      // Predicated region
      $region9: #{tpu_custom_call.1} parent=5 // pred_check
        _
      $region10: #{tpu_custom_call.1} parent=5 // pred_check_branch
        %197 = sbr.rel (%p194) target = $region12
      $region11: #{tpu_custom_call.1} parent=5 // pred_region
        %s198 = ssub.s32 %s22, 1
        // Predicated region
        $region13: #{tpu_custom_call.1} parent=11 // pred_check
          %p199 = pneg %p43
        $region14: #{tpu_custom_call.1} parent=11 // pred_check_branch
          %201 = sbr.rel (%p199) target = $region16
        $region15: #{tpu_custom_call.1} parent=11 // pred_region
          _
        $region16: #{tpu_custom_call.1} parent=11 // pred_fallthru
          _
        // Predicated region
        $region17: #{tpu_custom_call.1} parent=11 // pred_check
          %p202 = pneg %p64
        $region18: #{tpu_custom_call.1} parent=11 // pred_check_branch
          %204 = sbr.rel (%p202) target = $region20
        $region19: #{tpu_custom_call.1} parent=11 // pred_region
          _
        $region20: #{tpu_custom_call.1} parent=11 // pred_fallthru
          _
        // Predicated region
        $region21: #{tpu_custom_call.1} parent=11 // pred_check
          %p205 = pneg %p85
        $region22: #{tpu_custom_call.1} parent=11 // pred_check_branch
          %207 = sbr.rel (%p205) target = $region24
        $region23: #{tpu_custom_call.1} parent=11 // pred_region
          _
        $region24: #{tpu_custom_call.1} parent=11 // pred_fallthru
          _
        // Predicated region
        $region25: #{tpu_custom_call.1} parent=11 // pred_check
          %p208 = pneg %p106
        $region26: #{tpu_custom_call.1} parent=11 // pred_check_branch
          %210 = sbr.rel (%p208) target = $region28
        $region27: #{tpu_custom_call.1} parent=11 // pred_region
          _
        $region28: #{tpu_custom_call.1} parent=11 // pred_fallthru
          _
      $region12: #{tpu_custom_call.1} parent=5 // pred_fallthru
        _
      %p211 = scmp.lt.s32.totalorder %s22, 2
      // Predicated region
      $region29: #{tpu_custom_call.1} parent=5 // pred_check
        %p212 = pneg %p211
      $region30: #{tpu_custom_call.1} parent=5 // pred_check_branch
        %214 = sbr.rel (%p212) target = $region32
      $region31: #{tpu_custom_call.1} parent=5 // pred_region
        // Predicated region
        $region33: #{tpu_custom_call.1} parent=31 // pred_check
          %p215 = pneg %p126
        $region34: #{tpu_custom_call.1} parent=31 // pred_check_branch
          %217 = sbr.rel (%p215) target = $region36
        $region35: #{tpu_custom_call.1} parent=31 // pred_region
          %s218 = sand.u32 %s116, 1
          %s219 = sand.u32 %s116, 1
          %s220 = smul.addr %s219, 64
          %s221 = scalar_lea.vmem [#allocation5], %s220
          %s222 = smul.u32 2, %s22
          %s223 = smul.addr %s222, 4
          %s224 = scalar_lea.vmem %s5, %s223
          // Predicated region
          $region37: #{tpu_custom_call.1} parent=35 // pred_check
            _
          $region38: #{tpu_custom_call.1} parent=35 // pred_check_branch
            %226 = sbr.rel (0) target = $region40
          $region39: #{tpu_custom_call.1} parent=35 // pred_region
            // Predicated region
            $region41: #{tpu_custom_call.1} parent=39 // pred_check
              _
            $region42: #{tpu_custom_call.1} parent=39 // pred_check_branch
              %228 = sbr.rel (0) target = $region44
            $region43: #{tpu_custom_call.1} parent=39 // pred_region
              // Predicated region
              $region56: #{tpu_custom_call.1} parent=43 // pred_check
                _
              $region57: #{tpu_custom_call.1} parent=43 // pred_check_branch
                %258 = sbr.rel (0) target = $region59
              $region58: #{tpu_custom_call.1} parent=43 // pred_region
                loop: start=0, step=1, limit=1
                $region60: #{tpu_custom_call.1} parent=58 // loop_pre_header
                  _
                $region61: #{tpu_custom_call.1} parent=58 // loop_header
                  %s260 = sphi 0, %s264
                  %p261 = scmp.ge.s32.totalorder %s260, 1
                  %s265 = sphi %s224, %s224
                  %s266 = sphi %s221, %s221
                $region62: #{tpu_custom_call.1} parent=58 // loop_header_branch
                  %263 = sbr.rel (%p261) target = $region66
                $region63: #{tpu_custom_call.1} parent=58 // loop_body
                  %v267 = vld [vmem:[%s265] sm:$0xff]
                  %268 = vst [vmem:[%s266] sm:$0xff] %v267
                  %v269 = vld [vmem:[%s265 + $0x10] sm:$0xff]
                  %270 = vst [vmem:[%s266 + $0x8] sm:$0xff] %v269
                  %v271 = vld [vmem:[%s265 + $0x20] sm:$0xff]
                  %272 = vst [vmem:[%s266 + $0x10] sm:$0xff] %v271
                  %v273 = vld [vmem:[%s265 + $0x30] sm:$0xff]
                  %274 = vst [vmem:[%s266 + $0x18] sm:$0xff] %v273
                  %v275 = vld [vmem:[%s265 + $0x40] sm:$0xff]
                  %276 = vst [vmem:[%s266 + $0x20] sm:$0xff] %v275
                  %v277 = vld [vmem:[%s265 + $0x50] sm:$0xff]
                  %278 = vst [vmem:[%s266 + $0x28] sm:$0xff] %v277
                  %v279 = vld [vmem:[%s265 + $0x60] sm:$0xff]
                  %280 = vst [vmem:[%s266 + $0x30] sm:$0xff] %v279
                  %v281 = vld [vmem:[%s265 + $0x70] sm:$0xff]
                  %282 = vst [vmem:[%s266 + $0x38] sm:$0xff] %v281
                $region64: #{tpu_custom_call.1} parent=58 // loop_footer
                  %s264 = sadd.s32 1, %s260
                $region65: #{tpu_custom_call.1} parent=58 // loop_footer_branch
                  %259 = sbr.rel target = $region61
                $region66: #{tpu_custom_call.1} parent=58 // loop_exit
                  _
              $region59: #{tpu_custom_call.1} parent=43 // pred_fallthru
                _
              // Predicated region
              $region67: #{tpu_custom_call.1} parent=43 // pred_check
                _
              $region68: #{tpu_custom_call.1} parent=43 // pred_check_branch
                %284 = sbr.rel target = $region70
              $region69: #{tpu_custom_call.1} parent=43 // pred_region
                _
              $region70: #{tpu_custom_call.1} parent=43 // pred_fallthru
                _
            $region44: #{tpu_custom_call.1} parent=39 // pred_fallthru
              _
            // Predicated region
            $region45: #{tpu_custom_call.1} parent=39 // pred_check
              _
            $region46: #{tpu_custom_call.1} parent=39 // pred_check_branch
              %230 = sbr.rel target = $region48
            $region47: #{tpu_custom_call.1} parent=39 // pred_region
              %s232 = ssub.s32 256, 1
              loop: start=0, step=1, limit=1
              $region49: #{tpu_custom_call.1} parent=47 // loop_pre_header
                _
              $region50: #{tpu_custom_call.1} parent=47 // loop_header
                %s234 = sphi 0, %s238
                %p235 = scmp.ge.s32.totalorder %s234, 1
                %s239 = sphi %s224, %s224
                %s240 = sphi %s221, %s221
              $region51: #{tpu_custom_call.1} parent=47 // loop_header_branch
                %237 = sbr.rel (%p235) target = $region55
              $region52: #{tpu_custom_call.1} parent=47 // loop_body
                %v241 = vld [vmem:[%s239] sm:%s232]
                %242 = vst [vmem:[%s240] sm:%s232] %v241
                %v243 = vld [vmem:[%s239 + $0x10] sm:%s232]
                %244 = vst [vmem:[%s240 + $0x8] sm:%s232] %v243
                %v245 = vld [vmem:[%s239 + $0x20] sm:%s232]
                %246 = vst [vmem:[%s240 + $0x10] sm:%s232] %v245
                %v247 = vld [vmem:[%s239 + $0x30] sm:%s232]
                %248 = vst [vmem:[%s240 + $0x18] sm:%s232] %v247
                %v249 = vld [vmem:[%s239 + $0x40] sm:%s232]
                %250 = vst [vmem:[%s240 + $0x20] sm:%s232] %v249
                %v251 = vld [vmem:[%s239 + $0x50] sm:%s232]
                %252 = vst [vmem:[%s240 + $0x28] sm:%s232] %v251
                %v253 = vld [vmem:[%s239 + $0x60] sm:%s232]
                %254 = vst [vmem:[%s240 + $0x30] sm:%s232] %v253
                %v255 = vld [vmem:[%s239 + $0x70] sm:%s232]
                %256 = vst [vmem:[%s240 + $0x38] sm:%s232] %v255
              $region53: #{tpu_custom_call.1} parent=47 // loop_footer
                %s238 = sadd.s32 1, %s234
              $region54: #{tpu_custom_call.1} parent=47 // loop_footer_branch
                %233 = sbr.rel target = $region50
              $region55: #{tpu_custom_call.1} parent=47 // loop_exit
                _
            $region48: #{tpu_custom_call.1} parent=39 // pred_fallthru
              _
          $region40: #{tpu_custom_call.1} parent=35 // pred_fallthru
            _
          %285 = vnop
        $region36: #{tpu_custom_call.1} parent=31 // pred_fallthru
          _
        // Predicated region
        $region71: #{tpu_custom_call.1} parent=31 // pred_check
          %p286 = pneg %p152
        $region72: #{tpu_custom_call.1} parent=31 // pred_check_branch
          %288 = sbr.rel (%p286) target = $region74
        $region73: #{tpu_custom_call.1} parent=31 // pred_region
          %s289 = smul.u32 2, %s22
          %p290 = scmp.lt.s32.totalorder %s289, 3
          %s291 = scalar_select %p290, %s289, 3
          %s292 = scalar_lea.vmem %s6, %s291
          %s293 = smul.u32 2, %s22
        $region74: #{tpu_custom_call.1} parent=31 // pred_fallthru
          _
      $region32: #{tpu_custom_call.1} parent=5 // pred_fallthru
        _
      %p294 = scmp.le.s32.totalorder 1, %s22
      %p295 = scmp.lt.s32.totalorder %s22, 3
      %p296 = pnand %p294, %p295
      %p297 = pneg %p296
      // Predicated region
      $region75: #{tpu_custom_call.1} parent=5 // pred_check
        _
      $region76: #{tpu_custom_call.1} parent=5 // pred_check_branch
        %299 = sbr.rel (%p296) target = $region78
      $region77: #{tpu_custom_call.1} parent=5 // pred_region
        %s300 = ssub.s32 %s22, 1
        %s301 = sand.u32 %s119, 1
        %s302 = sand.u32 %s119, 1
        %s303 = smul.addr %s302, 64
        %s304 = scalar_lea.vmem [#allocation5], %s303
        // Predicated region
        $region79: #{tpu_custom_call.1} parent=77 // pred_check
          %p305 = pneg %p132
        $region80: #{tpu_custom_call.1} parent=77 // pred_check_branch
          %307 = sbr.rel (%p305) target = $region82
        $region81: #{tpu_custom_call.1} parent=77 // pred_region
          _
        $region82: #{tpu_custom_call.1} parent=77 // pred_fallthru
          _
        %p308 = pneg %p43
        %p309 = pneg %p40
        %p310 = pneg %p64
        %p311 = pneg %p61
        %p312 = pneg %p85
        %p313 = pneg %p82
        %p314 = pneg %p106
        %p315 = pneg %p103
        %s316 = sand.u32 %s119, 1
        %s317 = sand.u32 %s119, 1
        %s318 = smul.addr %s317, 64
        %s319 = scalar_lea.vmem [#allocation5], %s318
        %p320 = pneg %p132
        %p321 = pneg %p129
        %s322 = smul.u32 2, %s27
        %p323 = scmp.lt.s32.totalorder %s322, 3
        %s324 = scalar_select %p323, %s322, 3
        %s325 = scalar_lea.vmem %s6, %s324
        %p326 = pneg %p158
        %p327 = pneg %p155
        %p328 = pneg %p184
        %p329 = pneg %p181
        %s330 = sand.u32 %s171, 1
        %s331 = scalar_lea.sflag [#allocation7], %s330
        %s332 = sand.u32 %s171, 1
        %s333 = smul.addr %s332, 2
        %s334 = scalar_lea.vmem [#allocation6], %s333
        %s335 = smul.u32 2, %s27
        %s336 = smul.u32 2, %s27
        %p337 = scmp.lt.s32.totalorder %s336, 3
        %s338 = scalar_select %p337, %s336, 3
        %s339 = scalar_lea.vmem %s6, %s338
        %s340 = smul.u32 2, %s27
        %s341 = smul.u32 2, %s27
        %s343 = sld [smem:[#allocation4]]
        %s344 = scalar_lea.vmem %s1, %s343
        %v345 = vld [vmem:[%s344] sm:$0x1]
        %vm346 = vcmask 253952
        %347 = vst.msk [vmem:[#allocation2] sm:$0x1] %vm346, %v345
        %s348 = sld [smem:[#allocation4 + $0x1]]
        %s349 = scalar_lea.vmem %s1, %s348
        %v350 = vld [vmem:[%s349] sm:$0x1]
        %351 = vst.msk [vmem:[#allocation2 + $0x1] sm:$0x1] %vm346, %v350
        %s352 = sld [smem:[#allocation4 + $0x2]]
        %s353 = scalar_lea.vmem %s1, %s352
        %v354 = vld [vmem:[%s353] sm:$0x1]
        %355 = vst.msk [vmem:[#allocation2 + $0x2] sm:$0x1] %vm346, %v354
        %s356 = sld [smem:[#allocation4 + $0x3]]
        %s357 = scalar_lea.vmem %s1, %s356
        %v358 = vld [vmem:[%s357] sm:$0x1]
        %359 = vst.msk [vmem:[#allocation2 + $0x3] sm:$0x1] %vm346, %v358
        %s360 = sld [smem:[#allocation4 + $0x4]]
        %s361 = scalar_lea.vmem %s1, %s360
        %v362 = vld [vmem:[%s361] sm:$0x1]
        %363 = vst.msk [vmem:[#allocation2 + $0x4] sm:$0x1] %vm346, %v362
        %s364 = sld [smem:[#allocation4 + $0x5]]
        %s365 = scalar_lea.vmem %s1, %s364
        %v366 = vld [vmem:[%s365] sm:$0x1]
        %367 = vst.msk [vmem:[#allocation2 + $0x5] sm:$0x1] %vm346, %v366
        %s368 = sld [smem:[#allocation4 + $0x6]]
        %s369 = scalar_lea.vmem %s1, %s368
        %v370 = vld [vmem:[%s369] sm:$0x1]
        %371 = vst.msk [vmem:[#allocation2 + $0x6] sm:$0x1] %vm346, %v370
        %s372 = sld [smem:[#allocation4 + $0x7]]
        %s373 = scalar_lea.vmem %s1, %s372
        %v374 = vld [vmem:[%s373] sm:$0x1]
        %375 = vst.msk [vmem:[#allocation2 + $0x7] sm:$0x1] %vm346, %v374
        %v376 = vld [vmem:[#allocation2] sm:$0xff]
        %v377 = vpack.c.bf16 %v376, %v376
        %v378 = vld [vmem:[%s2] sm:$0xf]
        %v379 = vld [vmem:[%s2 + $0x4] sm:$0xf]
        %v380 = vld [vmem:[%s2 + $0x8] sm:$0xf]
        %v381 = vld [vmem:[%s2 + $0xc] sm:$0xf]
        %v382 = vld [vmem:[%s4] sm:$0x1]
        %v384 = vlaneseq
        %v385 = vshrl.u32 %v384, 7
        %v386 = vsub.s32 0, %v385
        %v387 = vrot.slane %v382, %v386
        %v393 = vunpack.c.l.b16 %v378
        %v394 = vunpack.c.l.b16 %v379
        %v395 = vunpack.c.l.b16 %v380
        %v396 = vunpack.c.l.b16 %v381
        %v397 = vpack.c.b16 %v394, %v393
        %v398 = vpack.c.b16 %v396, %v395
        %vm401 = vcmask 261120
        %v403 = vsel %vm401, %v377, 0
        %405 = vmatprep.subr.bf16.mxu0 0
        %406 = vmatpush1.bf16.msra.mxu0 0
        %407 = vmatprep.subr.bf16.mxu0 0
        %408 = vmatpush1.bf16.msra.mxu0 0
        %409 = vmatprep.subr.bf16.mxu0 0
        %410 = vmatpush1.bf16.msra.mxu0 0
        %411 = vmatprep.subr.bf16.mxu0 0
        %412 = vmatpush1.bf16.msra.mxu0 0
        %413 = vmatprep.subr.bf16.mxu0 0
        %414 = vmatpush1.bf16.msra.mxu0 0
        %415 = vmatprep.subr.bf16.mxu0 0
        %416 = vmatpush1.bf16.msra.mxu0 0
        %417 = vmatprep.subr.bf16.mxu0 0
        %418 = vmatpush1.bf16.msra.mxu0 %v398
        %419 = vmatprep.subr.bf16.mxu0 0
        %420 = vmatpush1.bf16.msra.mxu0 %v397
        %421 = vmatprep.subr.bf16.mxu0 0
        %422 = vmatpush2.bf16.msra.mxu0 0
        %423 = vmatprep.subr.bf16.mxu0 0
        %424 = vmatpush2.bf16.msra.mxu0 0
        %425 = vmatprep.subr.bf16.mxu0 0
        %426 = vmatpush2.bf16.msra.mxu0 0
        %427 = vmatprep.subr.bf16.mxu0 0
        %428 = vmatpush2.bf16.msra.mxu0 0
        %429 = vmatprep.subr.bf16.mxu0 0
        %430 = vmatpush2.bf16.msra.mxu0 0
        %431 = vmatprep.subr.bf16.mxu0 0
        %432 = vmatpush2.bf16.msra.mxu0 0
        %433 = vmatprep.subr.bf16.mxu0 0
        %434 = vmatpush2.bf16.msra.mxu0 0
        %435 = vmatprep.subr.bf16.mxu0 0
        %436 = vmatpush2.bf16.msra.mxu0 0
        %437 = vmatprep.mubr.bf16.mxu0 0
        %438 = vmatmul.mubr.bf16.gmra.mxu0 %v403
        %v439 = vpop.f32.mrf.mxu0
        %v440 = vadd.f32 %v387, %v439
        %v441 = vpop.f32.mrf.mxu0
        %v442 = vpop.f32.mrf.mxu0
        %v443 = vpop.f32.mrf.mxu0
        %444 = vdwg.mxu0
        %v445 = vld [vmem:[%s3] sm:$0xf]
        %v446 = vld [vmem:[%s3 + $0x4] sm:$0xf]
        %v447 = vld [vmem:[%s3 + $0x8] sm:$0xf]
        %v448 = vld [vmem:[%s3 + $0xc] sm:$0xf]
        %v453 = vunpack.c.l.b16 %v445
        %v454 = vunpack.c.l.b16 %v446
        %v455 = vunpack.c.l.b16 %v447
        %v456 = vunpack.c.l.b16 %v448
        %v457 = vpack.c.b16 %v454, %v453
        %v458 = vpack.c.b16 %v456, %v455
        %v462 = vsel %vm401, 0, 0
        %464 = vmatprep.subr.bf16.mxu0 0
        %465 = vmatpush1.bf16.msra.mxu0 0
        %466 = vmatprep.subr.bf16.mxu0 0
        %467 = vmatpush1.bf16.msra.mxu0 0
        %468 = vmatprep.subr.bf16.mxu0 0
        %469 = vmatpush1.bf16.msra.mxu0 0
        %470 = vmatprep.subr.bf16.mxu0 0
        %471 = vmatpush1.bf16.msra.mxu0 0
        %472 = vmatprep.subr.bf16.mxu0 0
        %473 = vmatpush1.bf16.msra.mxu0 0
        %474 = vmatprep.subr.bf16.mxu0 0
        %475 = vmatpush1.bf16.msra.mxu0 0
        %476 = vmatprep.subr.bf16.mxu0 0
        %477 = vmatpush1.bf16.msra.mxu0 %v458
        %478 = vmatprep.subr.bf16.mxu0 0
        %479 = vmatpush1.bf16.msra.mxu0 %v457
        %480 = vmatprep.subr.bf16.mxu0 0
        %481 = vmatpush2.bf16.msra.mxu0 0
        %482 = vmatprep.subr.bf16.mxu0 0
        %483 = vmatpush2.bf16.msra.mxu0 0
        %484 = vmatprep.subr.bf16.mxu0 0
        %485 = vmatpush2.bf16.msra.mxu0 0
        %486 = vmatprep.subr.bf16.mxu0 0
        %487 = vmatpush2.bf16.msra.mxu0 0
        %488 = vmatprep.subr.bf16.mxu0 0
        %489 = vmatpush2.bf16.msra.mxu0 0
        %490 = vmatprep.subr.bf16.mxu0 0
        %491 = vmatpush2.bf16.msra.mxu0 0
        %492 = vmatprep.subr.bf16.mxu0 0
        %493 = vmatpush2.bf16.msra.mxu0 0
        %494 = vmatprep.subr.bf16.mxu0 0
        %495 = vmatpush2.bf16.msra.mxu0 0
        %496 = vmatprep.mubr.bf16.mxu0 0
        %497 = vmatmul.mubr.bf16.gmra.mxu0 %v462
        %v498 = vpop.f32.mrf.mxu0
        %v499 = vadd.f32 0.0, %v498
        %v500 = vpop.f32.mrf.mxu0
        %v501 = vpop.f32.mrf.mxu0
        %v502 = vpop.f32.mrf.mxu0
        %503 = vdwg.mxu0
        %v504 = vadd.f32 %v440, %v499
        %v505 = vxor.u32 %v504, 2147483648
        %v506 = vmul.f32 %v505, 1.442695
        %v507 = vpow.pop %v506
        %v508 = vadd.f32 %v507, 1.0
        %v509 = vrcp.pop %v508
        %v510 = vmul.f32 1.0, %v509
        %v511 = vtanh.pop %v504
        %v512 = vmul.f32 %v510, 0.0
        %514 = vrot.lane.b32.xlu0 %v511, 64
        %v515 = vpop.permute.xlu0 %514
        %v517 = vmul.f32 %v510, %v515
        %519 = vrot.lane.b32.xlu0 %v517, 32
        %v520 = vpop.permute.xlu0 %519
        %v522 = vadd.f32 %v512, %v520
        %v523 = vtanh.pop %v522
        %525 = vrot.lane.b32.xlu0 %v523, 64
        %v526 = vpop.permute.xlu0 %525
        %v528 = vmul.f32 %v510, %v526
        %v529 = vpack.c.bf16 %v528, %v528
        %531 = vrot.lane.b32.xlu0 %v529, 32
        %v532 = vpop.permute.xlu0 %531
        %v534 = vsel %vm401, %v532, 0
        %536 = vmatprep.subr.bf16.mxu0 0
        %537 = vmatpush1.bf16.msra.mxu0 0
        %538 = vmatprep.subr.bf16.mxu0 0
        %539 = vmatpush1.bf16.msra.mxu0 0
        %540 = vmatprep.subr.bf16.mxu0 0
        %541 = vmatpush1.bf16.msra.mxu0 0
        %542 = vmatprep.subr.bf16.mxu0 0
        %543 = vmatpush1.bf16.msra.mxu0 0
        %544 = vmatprep.subr.bf16.mxu0 0
        %545 = vmatpush1.bf16.msra.mxu0 0
        %546 = vmatprep.subr.bf16.mxu0 0
        %547 = vmatpush1.bf16.msra.mxu0 0
        %548 = vmatprep.subr.bf16.mxu0 0
        %549 = vmatpush1.bf16.msra.mxu0 %v458
        %550 = vmatprep.subr.bf16.mxu0 0
        %551 = vmatpush1.bf16.msra.mxu0 %v457
        %552 = vmatprep.subr.bf16.mxu0 0
        %553 = vmatpush2.bf16.msra.mxu0 0
        %554 = vmatprep.subr.bf16.mxu0 0
        %555 = vmatpush2.bf16.msra.mxu0 0
        %556 = vmatprep.subr.bf16.mxu0 0
        %557 = vmatpush2.bf16.msra.mxu0 0
        %558 = vmatprep.subr.bf16.mxu0 0
        %559 = vmatpush2.bf16.msra.mxu0 0
        %560 = vmatprep.subr.bf16.mxu0 0
        %561 = vmatpush2.bf16.msra.mxu0 0
        %562 = vmatprep.subr.bf16.mxu0 0
        %563 = vmatpush2.bf16.msra.mxu0 0
        %564 = vmatprep.subr.bf16.mxu0 0
        %565 = vmatpush2.bf16.msra.mxu0 0
        %566 = vmatprep.subr.bf16.mxu0 0
        %567 = vmatpush2.bf16.msra.mxu0 0
        %568 = vmatprep.mubr.bf16.mxu0 0
        %569 = vmatmul.mubr.bf16.gmra.mxu0 %v534
        %v570 = vpop.f32.mrf.mxu0
        %v571 = vadd.f32 0.0, %v570
        %v572 = vpop.f32.mrf.mxu0
        %v573 = vpop.f32.mrf.mxu0
        %v574 = vpop.f32.mrf.mxu0
        %575 = vdwg.mxu0
        %v577 = vrot.slane %v571, 7
        %v579 = vadd.f32 %v440, %v577
        %v580 = vxor.u32 %v579, 2147483648
        %v581 = vmul.f32 %v580, 1.442695
        %v582 = vpow.pop %v581
        %v583 = vadd.f32 %v582, 1.0
        %v584 = vrcp.pop %v583
        %v585 = vmul.f32 1.0, %v584
        %v586 = vtanh.pop %v579
        %v588 = vrot.slane %v522, 7
        %v590 = vmul.f32 %v585, %v588
        %592 = vrot.lane.b32.xlu0 %v586, 64
        %v593 = vpop.permute.xlu0 %592
        %v595 = vmul.f32 %v585, %v593
        %597 = vrot.lane.b32.xlu0 %v595, 32
        %v598 = vpop.permute.xlu0 %597
        %v600 = vadd.f32 %v590, %v598
        %v601 = vtanh.pop %v600
        %603 = vrot.lane.b32.xlu0 %v601, 64
        %v604 = vpop.permute.xlu0 %603
        %v606 = vmul.f32 %v585, %v604
        %v607 = vpack.c.bf16 %v606, %v606
        %v609 = vshrl.u32 %v607, 16
        %611 = vrot.lane.b32.xlu0 %v609, 32
        %v612 = vpop.permute.xlu0 %611
        %v614 = vsel %vm401, %v612, 0
        %616 = vmatprep.subr.bf16.mxu0 0
        %617 = vmatpush1.bf16.msra.mxu0 0
        %618 = vmatprep.subr.bf16.mxu0 0
        %619 = vmatpush1.bf16.msra.mxu0 0
        %620 = vmatprep.subr.bf16.mxu0 0
        %621 = vmatpush1.bf16.msra.mxu0 0
        %622 = vmatprep.subr.bf16.mxu0 0
        %623 = vmatpush1.bf16.msra.mxu0 0
        %624 = vmatprep.subr.bf16.mxu0 0
        %625 = vmatpush1.bf16.msra.mxu0 0
        %626 = vmatprep.subr.bf16.mxu0 0
        %627 = vmatpush1.bf16.msra.mxu0 0
        %628 = vmatprep.subr.bf16.mxu0 0
        %629 = vmatpush1.bf16.msra.mxu0 %v458
        %630 = vmatprep.subr.bf16.mxu0 0
        %631 = vmatpush1.bf16.msra.mxu0 %v457
        %632 = vmatprep.subr.bf16.mxu0 0
        %633 = vmatpush2.bf16.msra.mxu0 0
        %634 = vmatprep.subr.bf16.mxu0 0
        %635 = vmatpush2.bf16.msra.mxu0 0
        %636 = vmatprep.subr.bf16.mxu0 0
        %637 = vmatpush2.bf16.msra.mxu0 0
        %638 = vmatprep.subr.bf16.mxu0 0
        %639 = vmatpush2.bf16.msra.mxu0 0
        %640 = vmatprep.subr.bf16.mxu0 0
        %641 = vmatpush2.bf16.msra.mxu0 0
        %642 = vmatprep.subr.bf16.mxu0 0
        %643 = vmatpush2.bf16.msra.mxu0 0
        %644 = vmatprep.subr.bf16.mxu0 0
        %645 = vmatpush2.bf16.msra.mxu0 0
        %646 = vmatprep.subr.bf16.mxu0 0
        %647 = vmatpush2.bf16.msra.mxu0 0
        %648 = vmatprep.mubr.bf16.mxu0 0
        %649 = vmatmul.mubr.bf16.gmra.mxu0 %v614
        %v650 = vpop.f32.mrf.mxu0
        %v651 = vadd.f32 0.0, %v650
        %v652 = vpop.f32.mrf.mxu0
        %v653 = vpop.f32.mrf.mxu0
        %v654 = vpop.f32.mrf.mxu0
        %655 = vdwg.mxu0
        %v657 = vrot.slane %v651, 6
        %v659 = vadd.f32 %v440, %v657
        %v660 = vxor.u32 %v659, 2147483648
        %v661 = vmul.f32 %v660, 1.442695
        %v662 = vpow.pop %v661
        %v663 = vadd.f32 %v662, 1.0
        %v664 = vrcp.pop %v663
        %v665 = vmul.f32 1.0, %v664
        %v666 = vtanh.pop %v659
        %v668 = vrot.slane %v600, 7
        %v670 = vmul.f32 %v665, %v668
        %672 = vrot.lane.b32.xlu0 %v666, 64
        %v673 = vpop.permute.xlu0 %672
        %v675 = vmul.f32 %v665, %v673
        %677 = vrot.lane.b32.xlu0 %v675, 32
        %v678 = vpop.permute.xlu0 %677
        %v680 = vadd.f32 %v670, %v678
        %v681 = vtanh.pop %v680
        %683 = vrot.lane.b32.xlu0 %v681, 64
        %v684 = vpop.permute.xlu0 %683
        %v686 = vmul.f32 %v665, %v684
        %v687 = vpack.c.bf16 %v686, %v686
        %v689 = vrot.slane %v687, 1
        %690 = vrot.lane.b32.xlu0 %v689, 32
        %v691 = vpop.permute.xlu0 %690
        %v693 = vsel %vm401, %v691, 0
        %695 = vmatprep.subr.bf16.mxu0 0
        %696 = vmatpush1.bf16.msra.mxu0 0
        %697 = vmatprep.subr.bf16.mxu0 0
        %698 = vmatpush1.bf16.msra.mxu0 0
        %699 = vmatprep.subr.bf16.mxu0 0
        %700 = vmatpush1.bf16.msra.mxu0 0
        %701 = vmatprep.subr.bf16.mxu0 0
        %702 = vmatpush1.bf16.msra.mxu0 0
        %703 = vmatprep.subr.bf16.mxu0 0
        %704 = vmatpush1.bf16.msra.mxu0 0
        %705 = vmatprep.subr.bf16.mxu0 0
        %706 = vmatpush1.bf16.msra.mxu0 0
        %707 = vmatprep.subr.bf16.mxu0 0
        %708 = vmatpush1.bf16.msra.mxu0 %v458
        %709 = vmatprep.subr.bf16.mxu0 0
        %710 = vmatpush1.bf16.msra.mxu0 %v457
        %711 = vmatprep.subr.bf16.mxu0 0
        %712 = vmatpush2.bf16.msra.mxu0 0
        %713 = vmatprep.subr.bf16.mxu0 0
        %714 = vmatpush2.bf16.msra.mxu0 0
        %715 = vmatprep.subr.bf16.mxu0 0
        %716 = vmatpush2.bf16.msra.mxu0 0
        %717 = vmatprep.subr.bf16.mxu0 0
        %718 = vmatpush2.bf16.msra.mxu0 0
        %719 = vmatprep.subr.bf16.mxu0 0
        %720 = vmatpush2.bf16.msra.mxu0 0
        %721 = vmatprep.subr.bf16.mxu0 0
        %722 = vmatpush2.bf16.msra.mxu0 0
        %723 = vmatprep.subr.bf16.mxu0 0
        %724 = vmatpush2.bf16.msra.mxu0 0
        %725 = vmatprep.subr.bf16.mxu0 0
        %726 = vmatpush2.bf16.msra.mxu0 0
        %727 = vmatprep.mubr.bf16.mxu0 0
        %728 = vmatmul.mubr.bf16.gmra.mxu0 %v693
        %v729 = vpop.f32.mrf.mxu0
        %v730 = vadd.f32 0.0, %v729
        %v731 = vpop.f32.mrf.mxu0
        %v732 = vpop.f32.mrf.mxu0
        %v733 = vpop.f32.mrf.mxu0
        %734 = vdwg.mxu0
        %v736 = vrot.slane %v730, 5
        %v738 = vadd.f32 %v440, %v736
        %v739 = vxor.u32 %v738, 2147483648
        %v740 = vmul.f32 %v739, 1.442695
        %v741 = vpow.pop %v740
        %v742 = vadd.f32 %v741, 1.0
        %v743 = vrcp.pop %v742
        %v744 = vmul.f32 1.0, %v743
        %v745 = vtanh.pop %v738
        %v747 = vrot.slane %v680, 7
        %v749 = vmul.f32 %v744, %v747
        %751 = vrot.lane.b32.xlu0 %v745, 64
        %v752 = vpop.permute.xlu0 %751
        %v754 = vmul.f32 %v744, %v752
        %756 = vrot.lane.b32.xlu0 %v754, 32
        %v757 = vpop.permute.xlu0 %756
        %v759 = vadd.f32 %v749, %v757
        %v760 = vtanh.pop %v759
        %762 = vrot.lane.b32.xlu0 %v760, 64
        %v763 = vpop.permute.xlu0 %762
        %v765 = vmul.f32 %v744, %v763
        %v766 = vpack.c.bf16 %v765, %v765
        %v768 = vshrl.u32 %v766, 16
        %v770 = vrot.slane %v768, 1
        %771 = vrot.lane.b32.xlu0 %v770, 32
        %v772 = vpop.permute.xlu0 %771
        %v774 = vsel %vm401, %v772, 0
        %776 = vmatprep.subr.bf16.mxu0 0
        %777 = vmatpush1.bf16.msra.mxu0 0
        %778 = vmatprep.subr.bf16.mxu0 0
        %779 = vmatpush1.bf16.msra.mxu0 0
        %780 = vmatprep.subr.bf16.mxu0 0
        %781 = vmatpush1.bf16.msra.mxu0 0
        %782 = vmatprep.subr.bf16.mxu0 0
        %783 = vmatpush1.bf16.msra.mxu0 0
        %784 = vmatprep.subr.bf16.mxu0 0
        %785 = vmatpush1.bf16.msra.mxu0 0
        %786 = vmatprep.subr.bf16.mxu0 0
        %787 = vmatpush1.bf16.msra.mxu0 0
        %788 = vmatprep.subr.bf16.mxu0 0
        %789 = vmatpush1.bf16.msra.mxu0 %v458
        %790 = vmatprep.subr.bf16.mxu0 0
        %791 = vmatpush1.bf16.msra.mxu0 %v457
        %792 = vmatprep.subr.bf16.mxu0 0
        %793 = vmatpush2.bf16.msra.mxu0 0
        %794 = vmatprep.subr.bf16.mxu0 0
        %795 = vmatpush2.bf16.msra.mxu0 0
        %796 = vmatprep.subr.bf16.mxu0 0
        %797 = vmatpush2.bf16.msra.mxu0 0
        %798 = vmatprep.subr.bf16.mxu0 0
        %799 = vmatpush2.bf16.msra.mxu0 0
        %800 = vmatprep.subr.bf16.mxu0 0
        %801 = vmatpush2.bf16.msra.mxu0 0
        %802 = vmatprep.subr.bf16.mxu0 0
        %803 = vmatpush2.bf16.msra.mxu0 0
        %804 = vmatprep.subr.bf16.mxu0 0
        %805 = vmatpush2.bf16.msra.mxu0 0
        %806 = vmatprep.subr.bf16.mxu0 0
        %807 = vmatpush2.bf16.msra.mxu0 0
        %808 = vmatprep.mubr.bf16.mxu0 0
        %809 = vmatmul.mubr.bf16.gmra.mxu0 %v774
        %v810 = vpop.f32.mrf.mxu0
        %v811 = vadd.f32 0.0, %v810
        %v812 = vpop.f32.mrf.mxu0
        %v813 = vpop.f32.mrf.mxu0
        %v814 = vpop.f32.mrf.mxu0
        %815 = vdwg.mxu0
        %v817 = vrot.slane %v811, 4
        %v819 = vadd.f32 %v440, %v817
        %v820 = vxor.u32 %v819, 2147483648
        %v821 = vmul.f32 %v820, 1.442695
        %v822 = vpow.pop %v821
        %v823 = vadd.f32 %v822, 1.0
        %v824 = vrcp.pop %v823
        %v825 = vmul.f32 1.0, %v824
        %v826 = vtanh.pop %v819
        %v828 = vrot.slane %v759, 7
        %v830 = vmul.f32 %v825, %v828
        %832 = vrot.lane.b32.xlu0 %v826, 64
        %v833 = vpop.permute.xlu0 %832
        %v835 = vmul.f32 %v825, %v833
        %837 = vrot.lane.b32.xlu0 %v835, 32
        %v838 = vpop.permute.xlu0 %837
        %v840 = vadd.f32 %v830, %v838
        %v841 = vtanh.pop %v840
        %843 = vrot.lane.b32.xlu0 %v841, 64
        %v844 = vpop.permute.xlu0 %843
        %v846 = vmul.f32 %v825, %v844
        %v847 = vpack.c.bf16 %v846, %v846
        %v849 = vrot.slane %v847, 2
        %850 = vrot.lane.b32.xlu0 %v849, 32
        %v851 = vpop.permute.xlu0 %850
        %v853 = vsel %vm401, %v851, 0
        %855 = vmatprep.subr.bf16.mxu0 0
        %856 = vmatpush1.bf16.msra.mxu0 0
        %857 = vmatprep.subr.bf16.mxu0 0
        %858 = vmatpush1.bf16.msra.mxu0 0
        %859 = vmatprep.subr.bf16.mxu0 0
        %860 = vmatpush1.bf16.msra.mxu0 0
        %861 = vmatprep.subr.bf16.mxu0 0
        %862 = vmatpush1.bf16.msra.mxu0 0
        %863 = vmatprep.subr.bf16.mxu0 0
        %864 = vmatpush1.bf16.msra.mxu0 0
        %865 = vmatprep.subr.bf16.mxu0 0
        %866 = vmatpush1.bf16.msra.mxu0 0
        %867 = vmatprep.subr.bf16.mxu0 0
        %868 = vmatpush1.bf16.msra.mxu0 %v458
        %869 = vmatprep.subr.bf16.mxu0 0
        %870 = vmatpush1.bf16.msra.mxu0 %v457
        %871 = vmatprep.subr.bf16.mxu0 0
        %872 = vmatpush2.bf16.msra.mxu0 0
        %873 = vmatprep.subr.bf16.mxu0 0
        %874 = vmatpush2.bf16.msra.mxu0 0
        %875 = vmatprep.subr.bf16.mxu0 0
        %876 = vmatpush2.bf16.msra.mxu0 0
        %877 = vmatprep.subr.bf16.mxu0 0
        %878 = vmatpush2.bf16.msra.mxu0 0
        %879 = vmatprep.subr.bf16.mxu0 0
        %880 = vmatpush2.bf16.msra.mxu0 0
        %881 = vmatprep.subr.bf16.mxu0 0
        %882 = vmatpush2.bf16.msra.mxu0 0
        %883 = vmatprep.subr.bf16.mxu0 0
        %884 = vmatpush2.bf16.msra.mxu0 0
        %885 = vmatprep.subr.bf16.mxu0 0
        %886 = vmatpush2.bf16.msra.mxu0 0
        %887 = vmatprep.mubr.bf16.mxu0 0
        %888 = vmatmul.mubr.bf16.gmra.mxu0 %v853
        %v889 = vpop.f32.mrf.mxu0
        %v890 = vadd.f32 0.0, %v889
        %v891 = vpop.f32.mrf.mxu0
        %v892 = vpop.f32.mrf.mxu0
        %v893 = vpop.f32.mrf.mxu0
        %894 = vdwg.mxu0
        %v896 = vrot.slane %v890, 3
        %v898 = vadd.f32 %v440, %v896
        %v899 = vxor.u32 %v898, 2147483648
        %v900 = vmul.f32 %v899, 1.442695
        %v901 = vpow.pop %v900
        %v902 = vadd.f32 %v901, 1.0
        %v903 = vrcp.pop %v902
        %v904 = vmul.f32 1.0, %v903
        %v905 = vtanh.pop %v898
        %v907 = vrot.slane %v840, 7
        %v909 = vmul.f32 %v904, %v907
        %911 = vrot.lane.b32.xlu0 %v905, 64
        %v912 = vpop.permute.xlu0 %911
        %v914 = vmul.f32 %v904, %v912
        %916 = vrot.lane.b32.xlu0 %v914, 32
        %v917 = vpop.permute.xlu0 %916
        %v919 = vadd.f32 %v909, %v917
        %v920 = vtanh.pop %v919
        %922 = vrot.lane.b32.xlu0 %v920, 64
        %v923 = vpop.permute.xlu0 %922
        %v925 = vmul.f32 %v904, %v923
        %v926 = vpack.c.bf16 %v925, %v925
        %v928 = vshrl.u32 %v926, 16
        %v930 = vrot.slane %v928, 2
        %931 = vrot.lane.b32.xlu0 %v930, 32
        %v932 = vpop.permute.xlu0 %931
        %v934 = vsel %vm401, %v932, 0
        %936 = vmatprep.subr.bf16.mxu0 0
        %937 = vmatpush1.bf16.msra.mxu0 0
        %938 = vmatprep.subr.bf16.mxu0 0
        %939 = vmatpush1.bf16.msra.mxu0 0
        %940 = vmatprep.subr.bf16.mxu0 0
        %941 = vmatpush1.bf16.msra.mxu0 0
        %942 = vmatprep.subr.bf16.mxu0 0
        %943 = vmatpush1.bf16.msra.mxu0 0
        %944 = vmatprep.subr.bf16.mxu0 0
        %945 = vmatpush1.bf16.msra.mxu0 0
        %946 = vmatprep.subr.bf16.mxu0 0
        %947 = vmatpush1.bf16.msra.mxu0 0
        %948 = vmatprep.subr.bf16.mxu0 0
        %949 = vmatpush1.bf16.msra.mxu0 %v458
        %950 = vmatprep.subr.bf16.mxu0 0
        %951 = vmatpush1.bf16.msra.mxu0 %v457
        %952 = vmatprep.subr.bf16.mxu0 0
        %953 = vmatpush2.bf16.msra.mxu0 0
        %954 = vmatprep.subr.bf16.mxu0 0
        %955 = vmatpush2.bf16.msra.mxu0 0
        %956 = vmatprep.subr.bf16.mxu0 0
        %957 = vmatpush2.bf16.msra.mxu0 0
        %958 = vmatprep.subr.bf16.mxu0 0
        %959 = vmatpush2.bf16.msra.mxu0 0
        %960 = vmatprep.subr.bf16.mxu0 0
        %961 = vmatpush2.bf16.msra.mxu0 0
        %962 = vmatprep.subr.bf16.mxu0 0
        %963 = vmatpush2.bf16.msra.mxu0 0
        %964 = vmatprep.subr.bf16.mxu0 0
        %965 = vmatpush2.bf16.msra.mxu0 0
        %966 = vmatprep.subr.bf16.mxu0 0
        %967 = vmatpush2.bf16.msra.mxu0 0
        %968 = vmatprep.mubr.bf16.mxu0 0
        %969 = vmatmul.mubr.bf16.gmra.mxu0 %v934
        %v970 = vpop.f32.mrf.mxu0
        %v971 = vadd.f32 0.0, %v970
        %v972 = vpop.f32.mrf.mxu0
        %v973 = vpop.f32.mrf.mxu0
        %v974 = vpop.f32.mrf.mxu0
        %975 = vdwg.mxu0
        %v977 = vrot.slane %v971, 2
        %v979 = vadd.f32 %v440, %v977
        %v980 = vxor.u32 %v979, 2147483648
        %v981 = vmul.f32 %v980, 1.442695
        %v982 = vpow.pop %v981
        %v983 = vadd.f32 %v982, 1.0
        %v984 = vrcp.pop %v983
        %v985 = vmul.f32 1.0, %v984
        %v986 = vtanh.pop %v979
        %v988 = vrot.slane %v919, 7
        %v990 = vmul.f32 %v985, %v988
        %992 = vrot.lane.b32.xlu0 %v986, 64
        %v993 = vpop.permute.xlu0 %992
        %v995 = vmul.f32 %v985, %v993
        %997 = vrot.lane.b32.xlu0 %v995, 32
        %v998 = vpop.permute.xlu0 %997
        %v1000 = vadd.f32 %v990, %v998
        %v1001 = vtanh.pop %v1000
        %1003 = vrot.lane.b32.xlu0 %v1001, 64
        %v1004 = vpop.permute.xlu0 %1003
        %v1006 = vmul.f32 %v985, %v1004
        %v1007 = vpack.c.bf16 %v1006, %v1006
        %v1009 = vrot.slane %v1007, 3
        %1010 = vrot.lane.b32.xlu0 %v1009, 32
        %v1011 = vpop.permute.xlu0 %1010
        %v1013 = vsel %vm401, %v1011, 0
        %1015 = vmatprep.subr.bf16.mxu0 0
        %1016 = vmatpush1.bf16.msra.mxu0 0
        %1017 = vmatprep.subr.bf16.mxu0 0
        %1018 = vmatpush1.bf16.msra.mxu0 0
        %1019 = vmatprep.subr.bf16.mxu0 0
        %1020 = vmatpush1.bf16.msra.mxu0 0
        %1021 = vmatprep.subr.bf16.mxu0 0
        %1022 = vmatpush1.bf16.msra.mxu0 0
        %1023 = vmatprep.subr.bf16.mxu0 0
        %1024 = vmatpush1.bf16.msra.mxu0 0
        %1025 = vmatprep.subr.bf16.mxu0 0
        %1026 = vmatpush1.bf16.msra.mxu0 0
        %1027 = vmatprep.subr.bf16.mxu0 0
        %1028 = vmatpush1.bf16.msra.mxu0 %v458
        %1029 = vmatprep.subr.bf16.mxu0 0
        %1030 = vmatpush1.bf16.msra.mxu0 %v457
        %1031 = vmatprep.subr.bf16.mxu0 0
        %1032 = vmatpush2.bf16.msra.mxu0 0
        %1033 = vmatprep.subr.bf16.mxu0 0
        %1034 = vmatpush2.bf16.msra.mxu0 0
        %1035 = vmatprep.subr.bf16.mxu0 0
        %1036 = vmatpush2.bf16.msra.mxu0 0
        %1037 = vmatprep.subr.bf16.mxu0 0
        %1038 = vmatpush2.bf16.msra.mxu0 0
        %1039 = vmatprep.subr.bf16.mxu0 0
        %1040 = vmatpush2.bf16.msra.mxu0 0
        %1041 = vmatprep.subr.bf16.mxu0 0
        %1042 = vmatpush2.bf16.msra.mxu0 0
        %1043 = vmatprep.subr.bf16.mxu0 0
        %1044 = vmatpush2.bf16.msra.mxu0 0
        %1045 = vmatprep.subr.bf16.mxu0 0
        %1046 = vmatpush2.bf16.msra.mxu0 0
        %1047 = vmatprep.mubr.bf16.mxu0 0
        %1048 = vmatmul.mubr.bf16.gmra.mxu0 %v1013
        %v1049 = vpop.f32.mrf.mxu0
        %v1050 = vadd.f32 0.0, %v1049
        %v1051 = vpop.f32.mrf.mxu0
        %v1052 = vpop.f32.mrf.mxu0
        %v1053 = vpop.f32.mrf.mxu0
        %1054 = vdwg.mxu0
        %v1056 = vrot.slane %v1050, 1
        %v1058 = vadd.f32 %v440, %v1056
        %v1059 = vxor.u32 %v1058, 2147483648
        %v1060 = vmul.f32 %v1059, 1.442695
        %v1061 = vpow.pop %v1060
        %v1062 = vadd.f32 %v1061, 1.0
        %v1063 = vrcp.pop %v1062
        %v1064 = vmul.f32 1.0, %v1063
        %v1065 = vtanh.pop %v1058
        %v1067 = vrot.slane %v1000, 7
        %v1069 = vmul.f32 %v1064, %v1067
        %1071 = vrot.lane.b32.xlu0 %v1065, 64
        %v1072 = vpop.permute.xlu0 %1071
        %v1074 = vmul.f32 %v1064, %v1072
        %1076 = vrot.lane.b32.xlu0 %v1074, 32
        %v1077 = vpop.permute.xlu0 %1076
        %v1079 = vadd.f32 %v1069, %v1077
        %v1080 = vtanh.pop %v1079
        %1082 = vrot.lane.b32.xlu0 %v1080, 64
        %v1083 = vpop.permute.xlu0 %1082
        %v1085 = vmul.f32 %v1064, %v1083
        %1087 = vrot.lane.b32.xlu0 %v1085, 32
        %v1088 = vpop.permute.xlu0 %1087
        %v1090 = vsel %vm401, %v1088, %v1079
        %v1091 = vpack.c.bf16 %v1090, %v1090
        %v1092 = vld [vmem:[%s304] sm:$0xff]
        %v1093 = vld [vmem:[%s304 + $0x8] sm:$0xff]
        %v1094 = vld [vmem:[%s304 + $0x10] sm:$0xff]
        %v1095 = vld [vmem:[%s304 + $0x18] sm:$0xff]
        %v1096 = vld [vmem:[%s304 + $0x20] sm:$0xff]
        %v1097 = vld [vmem:[%s304 + $0x28] sm:$0xff]
        %v1098 = vld [vmem:[%s304 + $0x30] sm:$0xff]
        %v1099 = vld [vmem:[%s304 + $0x38] sm:$0xff]
        %v1100 = vld [vmem:[%s339] sm:$0x3]
        %v1102 = vshrl.u32 %v1091, 16
        %v1104 = vrot.slane %v1102, 3
        %v1113 = vunpack.c.l.b16 %v1092
        %v1114 = vunpack.c.h.b16 %v1092
        %v1115 = vunpack.c.l.b16 %v1093
        %v1116 = vunpack.c.h.b16 %v1093
        %v1117 = vunpack.c.l.b16 %v1094
        %v1118 = vunpack.c.h.b16 %v1094
        %v1119 = vunpack.c.l.b16 %v1095
        %v1120 = vunpack.c.h.b16 %v1095
        %v1121 = vunpack.c.l.b16 %v1096
        %v1122 = vunpack.c.h.b16 %v1096
        %v1123 = vunpack.c.l.b16 %v1097
        %v1124 = vunpack.c.h.b16 %v1097
        %v1125 = vunpack.c.l.b16 %v1098
        %v1126 = vunpack.c.h.b16 %v1098
        %v1127 = vunpack.c.l.b16 %v1099
        %v1128 = vunpack.c.h.b16 %v1099
        %v1129 = vpack.c.b16 %v1115, %v1113
        %v1130 = vpack.c.b16 %v1116, %v1114
        %v1131 = vpack.c.b16 %v1119, %v1117
        %v1132 = vpack.c.b16 %v1120, %v1118
        %v1133 = vpack.c.b16 %v1123, %v1121
        %v1134 = vpack.c.b16 %v1124, %v1122
        %v1135 = vpack.c.b16 %v1127, %v1125
        %v1136 = vpack.c.b16 %v1128, %v1126
        %v1146 = vlaneseq
        %v1147 = vshrl.u32 %v1146, 7
        %v1148 = vsub.s32 0, %v1147
        %v1149 = vrot.slane %v1100, %v1148
        %v1150 = vlaneseq
        %v1151 = vshrl.u32 %v1150, 7
        %v1152 = vsub.s32 1, %v1151
        %v1153 = vrot.slane %v1100, %v1152
        %vm1156 = vcmask 523264
        %v1158 = vsel %vm1156, %v1104, 0
        %1160 = vmatprep.subr.bf16.mxu0 0
        %1161 = vmatpush1.bf16.msra.mxu0 0
        %1162 = vmatprep.subr.bf16.mxu0 0
        %1163 = vmatpush1.bf16.msra.mxu0 0
        %1164 = vmatprep.subr.bf16.mxu0 0
        %1165 = vmatpush1.bf16.msra.mxu0 0
        %1166 = vmatprep.subr.bf16.mxu0 0
        %1167 = vmatpush1.bf16.msra.mxu0 0
        %1168 = vmatprep.subr.bf16.mxu0 %v1136
        %1169 = vmatpush1.bf16.msra.mxu0 %v1135
        %1170 = vmatprep.subr.bf16.mxu0 %v1134
        %1171 = vmatpush1.bf16.msra.mxu0 %v1133
        %1172 = vmatprep.subr.bf16.mxu0 %v1132
        %1173 = vmatpush1.bf16.msra.mxu0 %v1131
        %1174 = vmatprep.subr.bf16.mxu0 %v1130
        %1175 = vmatpush1.bf16.msra.mxu0 %v1129
        %1176 = vmatprep.subr.bf16.mxu0 0
        %1177 = vmatpush2.bf16.msra.mxu0 0
        %1178 = vmatprep.subr.bf16.mxu0 0
        %1179 = vmatpush2.bf16.msra.mxu0 0
        %1180 = vmatprep.subr.bf16.mxu0 0
        %1181 = vmatpush2.bf16.msra.mxu0 0
        %1182 = vmatprep.subr.bf16.mxu0 0
        %1183 = vmatpush2.bf16.msra.mxu0 0
        %1184 = vmatprep.subr.bf16.mxu0 0
        %1185 = vmatpush2.bf16.msra.mxu0 0
        %1186 = vmatprep.subr.bf16.mxu0 0
        %1187 = vmatpush2.bf16.msra.mxu0 0
        %1188 = vmatprep.subr.bf16.mxu0 0
        %1189 = vmatpush2.bf16.msra.mxu0 0
        %1190 = vmatprep.subr.bf16.mxu0 0
        %1191 = vmatpush2.bf16.msra.mxu0 0
        %1192 = vmatprep.mubr.bf16.mxu0 0
        %1193 = vmatmul.mubr.bf16.gmra.mxu0 %v1158
        %v1194 = vpop.f32.mrf.mxu0
        %v1195 = vadd.f32 %v1149, %v1194
        %v1196 = vpop.f32.mrf.mxu0
        %v1197 = vadd.f32 %v1153, %v1196
        %v1198 = vpop.f32.mrf.mxu0
        %v1199 = vpop.f32.mrf.mxu0
        %1200 = vdwg.mxu0
        %v1203 = vcombine.low %v1195, %v1197
        %v1205 = vunpack.c.l.s4 1966171168
        %v1206 = vunpack.c.0.s8 %v1205
        %v1207 = vlaneseq
        %v1208 = vshrl.u32 %v1207, 7
        %v1209 = vsub.s32 %v1206, %v1208
        %v1210 = vrot.slane %v1203, %v1209
        %v1212 = vunpack.c.l.s4 1966171168
        %v1213 = vunpack.c.0.s8 %v1212
        %v1214 = vlaneseq
        %v1215 = vshrl.u32 %v1214, 7
        %v1216 = vsub.s32 %v1213, %v1215
        %v1217 = vrot.slane %v1210, %v1216
        %v1219 = vlaneseq
        %vm1220 = vcmp.ge.s32.totalorder %v1219, 0
        %vm1221 = vcmp.lt.s32.totalorder %v1219, 256
        %vm1222 = vmand %vm1220, %vm1221
        %1223 = vst.msk [vmem:[%s334] sm:$0x3] %vm1222, %v1217
        %s1224 = sand.u32 %s171, 1
        %s1225 = scalar_lea.sflag [#allocation7], %s1224
        %s1226 = sand.u32 %s171, 1
        %s1227 = smul.addr %s1226, 2
        %s1228 = scalar_lea.vmem [#allocation6], %s1227
        // Predicated region
        $region83: #{tpu_custom_call.1} parent=77 // pred_check
          %p1229 = pneg %p181
        $region84: #{tpu_custom_call.1} parent=77 // pred_check_branch
          %1231 = sbr.rel (%p1229) target = $region86
        $region85: #{tpu_custom_call.1} parent=77 // pred_region
          %s1232 = smul.u32 2, %s27
          %s1234 = ssub.s32 32, 32
          %1235 = vsyncadd %s1225, %s1234
          %s1236 = smul.addr %s1232, 16
          %s1237 = scalar_lea.hbm %s7, %s1236
          %s1239 = sshll.u32 %s1228, 4
          %s1240 = int_to_ptr.vmem [resolvable:$true] %s1239
          %1242 = dma.vmem_to_hbm [thread:$0]  %s1240, 32, %s1237, %s1225
        $region86: #{tpu_custom_call.1} parent=77 // pred_fallthru
          _
      $region78: #{tpu_custom_call.1} parent=5 // pred_fallthru
        _
      %p1243 = scmp.le.s32.totalorder 2, %s22
      // Predicated region
      $region87: #{tpu_custom_call.1} parent=5 // pred_check
        %p1244 = pneg %p1243
      $region88: #{tpu_custom_call.1} parent=5 // pred_check_branch
        %1246 = sbr.rel (%p1244) target = $region90
      $region89: #{tpu_custom_call.1} parent=5 // pred_region
        %s1247 = ssub.s32 %s22, 2
        // Predicated region
        $region91: #{tpu_custom_call.1} parent=89 // pred_check
          %p1248 = pneg %p187
        $region92: #{tpu_custom_call.1} parent=89 // pred_check_branch
          %1250 = sbr.rel (%p1248) target = $region94
        $region93: #{tpu_custom_call.1} parent=89 // pred_region
          %s1251 = sand.u32 %s172, 1
          %s1252 = scalar_lea.sflag [#allocation7], %s1251
          %s1253 = sand.u32 %s172, 1
          %s1254 = smul.addr %s1253, 2
          %s1255 = scalar_lea.vmem [#allocation6], %s1254
          %1256 = dma.done %s1252, 32
        $region94: #{tpu_custom_call.1} parent=89 // pred_fallthru
          _
      $region90: #{tpu_custom_call.1} parent=5 // pred_fallthru
        _
    $region6: #{tpu_custom_call.1} parent=1 // loop_footer
      %s26 = sadd.s32 1, %s22
    $region7: #{tpu_custom_call.1} parent=1 // loop_footer_branch
      %21 = sbr.rel target = $region3
    $region8: #{tpu_custom_call.1} parent=1 // loop_exit
      _
    %1257 = vsyncpa [#allocation7], 1
    %s1258 = scalar_lea.sflag [#allocation7], 1
    %1259 = vsyncpa %s1258, 1

</llo_original>
